<compile_context>
chip_gen: v5e
topology: v5e:2x2
jax: 0.10.0
libtpu: 0.0.40
codegen_flags: <defaults>
</compile_context>

<pallas_src>
import jax
import jax.numpy as jnp
from jax.experimental import pallas as pl
from jax.experimental.pallas import tpu as pltpu

_LANE = 128               # lane width / batch elements per output row
_COLS = 6 * _LANE         # 768 input columns per row
_MAX_TILE_ROWS = 1024     # 1024 rows * 768 * 4 B = 3 MiB per input buffer;
                          # double-buffered in/out + S + p*p temp ~= 12-15 MiB,
                          # inside the 32 MiB vmem_limit set below.


def _round_up(x, n):
    return -(-x // n) * n


def _tp_kernel(p_ref, s_ref, o_ref):
    # p_ref: (tile_rows, 768) VMEM; s_ref: (768, 128) VMEM constant block;
    # o_ref: (tile_rows, 128) VMEM (lane-dense, unmasked stores).
    p = p_ref[...]
    o_ref[...] = jnp.dot(
        p * p,
        s_ref[...],
        precision=jax.lax.Precision.HIGHEST,   # exact f32 multi-pass on the MXU
        preferred_element_type=jnp.float32,
    ).astype(o_ref.dtype)


def tp_forward(p, m_i, m_j, m_k):
    """Pallas TPU implementation of Tp.forward: [B, 6] float -> [B] float."""
    assert p.ndim == 2 and p.shape[1] == 6, p.shape
    B = p.shape[0]
    dtype = p.dtype

    # Pad only to the next multiple of 128 so the contiguous reshape below is
    # legal; this is a no-op when B is already 128-aligned.
    rows = pl.cdiv(B, _LANE)
    B_pad = rows * _LANE
    if B_pad != B:
        p = jnp.pad(p, ((0, B_pad - B), (0, 0)))

    # Free contiguous view: no transpose, no extra HBM pass.
    p2 = p.reshape(rows, _COLS)

    # Tile selection: big tiles to amortize per-step overhead, but always >= 2
    # grid steps for mid/large batches (v7x has 2 TCs), and never round `rows`
    # up to a tile multiple — the partial last block is masked by Pallas.
    if rows <= 8:
        tile_rows = rows                      # single full-dim block
    elif rows <= 2 * _MAX_TILE_ROWS:
        tile_rows = min(_MAX_TILE_ROWS, _round_up(pl.cdiv(rows, 2), 8))
    else:
        tile_rows = _MAX_TILE_ROWS
    grid = (pl.cdiv(rows, tile_rows),)

    # Constant mass matrix: S[6*j + c, j] = m_c / 2 (folds the /2 and the *m
    # into the contraction).  384 KiB; constant index_map -> fetched once.
    half_m = jnp.array([m_i, m_i, m_j, m_j, m_k, m_k], dtype=dtype) * 0.5   # (6,)
    eye = jnp.eye(_LANE, dtype=dtype)                                       # (128,128)
    S = (eye[:, None, :] * half_m[None, :, None]).reshape(_COLS, _LANE)

    elem_bytes = jnp.dtype(dtype).itemsize
    out = pl.pallas_call(
        _tp_kernel,
        out_shape=jax.ShapeDtypeStruct((rows, _LANE), dtype),
        grid=grid,
        in_specs=[
            pl.BlockSpec((tile_rows, _COLS), lambda i: (i, 0)),
            pl.BlockSpec((_COLS, _LANE), lambda i: (0, 0)),    # constant block
        ],
        out_specs=pl.BlockSpec((tile_rows, _LANE), lambda i: (i, 0)),
        compiler_params=pltpu.CompilerParams(
            dimension_semantics=("parallel",),
            vmem_limit_bytes=32 * 1024 * 1024,  # headroom over v5e's 16 MiB default
        ),
        cost_estimate=pl.CostEstimate(
            flops=2 * rows * _COLS * _LANE,     # actual MXU work
            transcendentals=0,
            bytes_accessed=(rows * (_COLS + _LANE) + _COLS * _LANE) * elem_bytes,
        ),
    )(p2, S)

    return out.reshape(B_pad)[:B]


def tp_reference(p, m_i, m_j, m_k):
    p_i_x = p[:, 0]
    p_i_y = p[:, 1]
    p_j_x = p[:, 2]
    p_j_y = p[:, 3]
    p_k_x = p[:, 4]
    p_k_y = p[:, 5]
    tp_i = p_i_x ** 2 / 2 * m_i + p_i_y ** 2 / 2 * m_i
    tp_j = p_j_x ** 2 / 2 * m_j + p_j_y ** 2 / 2 * m_j
    tp_k = p_k_x ** 2 / 2 * m_k + p_k_y ** 2 / 2 * m_k
    return tp_i + tp_j + tp_k


if __name__ == "__main__":
    # Deterministic masses (constructor args of Tp) and inputs.
    m_i, m_j, m_k = 1.0, 2.0, 3.0
    key = jax.random.PRNGKey(0)

    # B=200 exercises the pad-to-128 path (single full-dim block);
    # B=1300 exercises the multi-step grid with a masked partial last block.
    for B in (200, 1300):
        p = jax.random.normal(jax.random.fold_in(key, B), (B, 6), dtype=jnp.float32)
        out = jax.block_until_ready(tp_forward(p, m_i, m_j, m_k))
        ref = tp_reference(p, m_i, m_j, m_k)
        assert out.shape == (B,), out.shape
        assert jnp.allclose(out, ref, atol=1e-5, rtol=1e-5), (B, out, ref)

    print("KERNEL_OK")
</pallas_src>

<mosaic_0001>
module attributes {stable_mosaic.version = 11 : i64} {
  func.func @_tp_kernel(%arg0: i32, %arg1: memref<2x768xf32, #tpu.memory_space<vmem>>, %arg2: memref<768x128xf32, #tpu.memory_space<vmem>>, %arg3: memref<2x128xf32, #tpu.memory_space<vmem>>) attributes {dimension_semantics = [#tpu.dimension_semantics<parallel>], iteration_bounds = array<i64: 1>, scalar_prefetch = 0 : i64, scratch_operands = 0 : i64, tpu.core_type = #tpu.core_type<tc>, window_params = [{transform_indices = @transform_0, window_bounds = array<i64: 2, 768>}, {pipeline_mode = #tpu.pipeline_mode<synchronous>, transform_indices = @transform_1, window_bounds = array<i64: 768, 128>}, {transform_indices = @transform_2, window_bounds = array<i64: 2, 128>}]} {
    %c0 = arith.constant 0 : index
    %c0_0 = arith.constant 0 : index
    %0 = vector.load %arg1[%c0, %c0_0] : memref<2x768xf32, #tpu.memory_space<vmem>>, vector<2x768xf32>
    %1 = arith.mulf %0, %0 : vector<2x768xf32>
    %c0_1 = arith.constant 0 : index
    %c0_2 = arith.constant 0 : index
    %2 = vector.load %arg2[%c0_1, %c0_2] : memref<768x128xf32, #tpu.memory_space<vmem>>, vector<768x128xf32>
    %cst = arith.constant dense<0.000000e+00> : vector<2x128xf32>
    %3 = tpu.matmul %1, %2, %cst {dimension_numbers = #tpu.dot_dimension_numbers<[1], [0], [0], [1], [0, 0, 1, 1], [], []>, precision = #tpu.contract_precision<fp32>} : vector<2x768xf32>, vector<768x128xf32>, vector<2x128xf32> -> vector<2x128xf32>
    %c0_3 = arith.constant 0 : index
    %c0_4 = arith.constant 0 : index
    %4 = vector.load %arg3[%c0_3, %c0_4] : memref<2x128xf32, #tpu.memory_space<vmem>>, vector<2x128xf32>
    tpu.vector_store %arg3[%c0_3, %c0_4], %3 {strides = array<i32>} : memref<2x128xf32, #tpu.memory_space<vmem>>, vector<2x128xf32>,
    return
  }
  func.func @transform_0(%arg0: i32) -> (i32, i32) {
    %c0_i32 = arith.constant 0 : i32
    %c0_i32_0 = arith.constant 0 : i32
    return %arg0, %c0_i32 : i32, i32
  }
  func.func @transform_1(%arg0: i32) -> (i32, i32) {
    %c0_i32 = arith.constant 0 : i32
    %c0_i32_0 = arith.constant 0 : i32
    %c0_i32_1 = arith.constant 0 : i32
    return %c0_i32, %c0_i32_0 : i32, i32
  }
  func.func @transform_2(%arg0: i32) -> (i32, i32) {
    %c0_i32 = arith.constant 0 : i32
    %c0_i32_0 = arith.constant 0 : i32
    return %arg0, %c0_i32 : i32, i32
  }
}

</mosaic_0001>

<llo_original>
// kernel: tpu_custom_call.1
$region0: #{tpu_custom_call.1}
  #allocation0 [shape = 'u32[]', space=smem, size = 0x4, offset = 0x4, fixed_abs, tag = 'smem constant byte address 0x4 - core index']
  #allocation1 [shape = 'u32[72,128]{1,0:T(1,128)}', space=vmem, size = 0x9000, scoped, tag = 'internal scratch']
  %s0 = inlined_call_operand.hbm [shape: f32[2,768], index: 0, kind: input, shape index: {}]
  %s1 = inlined_call_operand.hbm [shape: f32[768,128], index: 1, kind: input, shape index: {}]
  %s2 = inlined_call_operand.hbm [shape: f32[2,128], index: 2, kind: output, shape index: {}]
  %s3 = sld [smem:[#allocation0]]
  $region26: #{tpu_custom_call.1} parent=0
    _
  %s5 = ssub.s32 1, %s3
  %s6 = scalar_select 0, %s5, %s3
  $region1: #{tpu_custom_call.1} parent=0
    #allocation2 [shape = 'u8[6144]{0}', space=vmem, size = 0x1800, scoped, tag = 'input window, operand 0, single buffered']
    #allocation3 [shape = 's32[1]{0}', space=sflag, size = 0x4, scoped, tag = 'scoped memory for tpu_custom_call.1']
    #allocation4 [shape = 's32[1]{0}', space=sflag, size = 0x4, scoped, tag = 'scoped memory for tpu_custom_call.1']
    #allocation5 [shape = 'u8[393216]{0}', space=vmem, size = 0x60000, scoped, tag = 'input window, operand 1, single buffered']
    #allocation6 [shape = 's32[1]{0}', space=sflag, size = 0x4, scoped, tag = 'scoped memory for tpu_custom_call.1']
    #allocation7 [shape = 'u8[1024]{0}', space=vmem, size = 0x400, scoped, tag = 'output window, operand 0, single buffered']
    %7 = vsyncpa [#allocation3], 0
    %8 = vsyncpa [#allocation6], 0
    %9 = vsyncpa [#allocation4], 0
    // Predicated region
    $region2: #{tpu_custom_call.1} parent=1 // pred_check
      _
    $region3: #{tpu_custom_call.1} parent=1 // pred_check_branch
      %11 = sbr.rel (0) target = $region5
    $region4: #{tpu_custom_call.1} parent=1 // pred_region
      %13 = vsyncadd [#allocation3], 0
      %s15 = sshll.u32 %s0, 4
      %s16 = int_to_ptr.hbm [resolvable:$true] %s15
      %s17 = sshll.u32 [#allocation2], 4
      %s18 = int_to_ptr.vmem [resolvable:$true] %s17
      %20 = dma.hbm_to_vmem [thread:$0]  %s16, 192, %s18, [#allocation3]
    $region5: #{tpu_custom_call.1} parent=1 // pred_fallthru
      _
    // Predicated region
    $region6: #{tpu_custom_call.1} parent=1 // pred_check
      _
    $region7: #{tpu_custom_call.1} parent=1 // pred_check_branch
      %22 = sbr.rel (0) target = $region9
    $region8: #{tpu_custom_call.1} parent=1 // pred_region
      %24 = vsyncadd [#allocation6], 0
      %s25 = sshll.u32 %s1, 4
      %s26 = int_to_ptr.hbm [resolvable:$true] %s25
      %s27 = sshll.u32 [#allocation5], 4
      %s28 = int_to_ptr.vmem [resolvable:$true] %s27
      %33 = dma.hbm_to_vmem [thread:$0]  %s26, 12288, %s28, [#allocation6], 128, 128, 8
    $region9: #{tpu_custom_call.1} parent=1 // pred_fallthru
      _
    // Predicated region
    $region10: #{tpu_custom_call.1} parent=1 // pred_check
      _
    $region11: #{tpu_custom_call.1} parent=1 // pred_check_branch
      %35 = sbr.rel (0) target = $region13
    $region12: #{tpu_custom_call.1} parent=1 // pred_region
      %37 = dma.done [#allocation3], 192
    $region13: #{tpu_custom_call.1} parent=1 // pred_fallthru
      _
    // Predicated region
    $region14: #{tpu_custom_call.1} parent=1 // pred_check
      _
    $region15: #{tpu_custom_call.1} parent=1 // pred_check_branch
      %39 = sbr.rel (0) target = $region17
    $region16: #{tpu_custom_call.1} parent=1 // pred_region
      %41 = dma.done [#allocation6], 12288
    $region17: #{tpu_custom_call.1} parent=1 // pred_fallthru
      _
    %v42 = vld [vmem:[#allocation2] sm:$0xff]
    %v43 = vld [vmem:[#allocation2 + $0x8] sm:$0xf]
    %v44 = vmul.f32 %v42, %v42
    %v45 = vmul.f32 %v43, %v43
    %v46 = vld [vmem:[#allocation5] sm:$0xff]
    %v47 = vld [vmem:[#allocation5 + $0x8] sm:$0xff]
    %v48 = vld [vmem:[#allocation5 + $0x10] sm:$0xff]
    %v49 = vld [vmem:[#allocation5 + $0x18] sm:$0xff]
    %v50 = vld [vmem:[#allocation5 + $0x20] sm:$0xff]
    %v51 = vld [vmem:[#allocation5 + $0x28] sm:$0xff]
    %v52 = vld [vmem:[#allocation5 + $0x30] sm:$0xff]
    %v53 = vld [vmem:[#allocation5 + $0x38] sm:$0xff]
    %v54 = vld [vmem:[#allocation5 + $0x40] sm:$0xff]
    %v55 = vld [vmem:[#allocation5 + $0x48] sm:$0xff]
    %v56 = vld [vmem:[#allocation5 + $0x50] sm:$0xff]
    %v57 = vld [vmem:[#allocation5 + $0x58] sm:$0xff]
    %v58 = vld [vmem:[#allocation5 + $0x60] sm:$0xff]
    %v59 = vld [vmem:[#allocation5 + $0x68] sm:$0xff]
    %v60 = vld [vmem:[#allocation5 + $0x70] sm:$0xff]
    %v61 = vld [vmem:[#allocation5 + $0x78] sm:$0xff]
    %v62 = vld [vmem:[#allocation5 + $0x80] sm:$0xff]
    %v63 = vld [vmem:[#allocation5 + $0x88] sm:$0xff]
    %v64 = vld [vmem:[#allocation5 + $0x90] sm:$0xff]
    %v65 = vld [vmem:[#allocation5 + $0x98] sm:$0xff]
    %v66 = vld [vmem:[#allocation5 + $0xa0] sm:$0xff]
    %v67 = vld [vmem:[#allocation5 + $0xa8] sm:$0xff]
    %v68 = vld [vmem:[#allocation5 + $0xb0] sm:$0xff]
    %v69 = vld [vmem:[#allocation5 + $0xb8] sm:$0xff]
    %v70 = vld [vmem:[#allocation5 + $0xc0] sm:$0xff]
    %v71 = vld [vmem:[#allocation5 + $0xc8] sm:$0xff]
    %v72 = vld [vmem:[#allocation5 + $0xd0] sm:$0xff]
    %v73 = vld [vmem:[#allocation5 + $0xd8] sm:$0xff]
    %v74 = vld [vmem:[#allocation5 + $0xe0] sm:$0xff]
    %v75 = vld [vmem:[#allocation5 + $0xe8] sm:$0xff]
    %v76 = vld [vmem:[#allocation5 + $0xf0] sm:$0xff]
    %v77 = vld [vmem:[#allocation5 + $0xf8] sm:$0xff]
    %v78 = vld [vmem:[#allocation5 + $0x100] sm:$0xff]
    %v79 = vld [vmem:[#allocation5 + $0x108] sm:$0xff]
    %v80 = vld [vmem:[#allocation5 + $0x110] sm:$0xff]
    %v81 = vld [vmem:[#allocation5 + $0x118] sm:$0xff]
    %v82 = vld [vmem:[#allocation5 + $0x120] sm:$0xff]
    %v83 = vld [vmem:[#allocation5 + $0x128] sm:$0xff]
    %v84 = vld [vmem:[#allocation5 + $0x130] sm:$0xff]
    %v85 = vld [vmem:[#allocation5 + $0x138] sm:$0xff]
    %v86 = vld [vmem:[#allocation5 + $0x140] sm:$0xff]
    %v87 = vld [vmem:[#allocation5 + $0x148] sm:$0xff]
    %v88 = vld [vmem:[#allocation5 + $0x150] sm:$0xff]
    %v89 = vld [vmem:[#allocation5 + $0x158] sm:$0xff]
    %v90 = vld [vmem:[#allocation5 + $0x160] sm:$0xff]
    %v91 = vld [vmem:[#allocation5 + $0x168] sm:$0xff]
    %v92 = vld [vmem:[#allocation5 + $0x170] sm:$0xff]
    %v93 = vld [vmem:[#allocation5 + $0x178] sm:$0xff]
    %v94 = vld [vmem:[#allocation5 + $0x180] sm:$0xff]
    %v95 = vld [vmem:[#allocation5 + $0x188] sm:$0xff]
    %v96 = vld [vmem:[#allocation5 + $0x190] sm:$0xff]
    %v97 = vld [vmem:[#allocation5 + $0x198] sm:$0xff]
    %v98 = vld [vmem:[#allocation5 + $0x1a0] sm:$0xff]
    %v99 = vld [vmem:[#allocation5 + $0x1a8] sm:$0xff]
    %v100 = vld [vmem:[#allocation5 + $0x1b0] sm:$0xff]
    %v101 = vld [vmem:[#allocation5 + $0x1b8] sm:$0xff]
    %v102 = vld [vmem:[#allocation5 + $0x1c0] sm:$0xff]
    %v103 = vld [vmem:[#allocation5 + $0x1c8] sm:$0xff]
    %v104 = vld [vmem:[#allocation5 + $0x1d0] sm:$0xff]
    %v105 = vld [vmem:[#allocation5 + $0x1d8] sm:$0xff]
    %v106 = vld [vmem:[#allocation5 + $0x1e0] sm:$0xff]
    %v107 = vld [vmem:[#allocation5 + $0x1e8] sm:$0xff]
    %v108 = vld [vmem:[#allocation5 + $0x1f0] sm:$0xff]
    %v109 = vld [vmem:[#allocation5 + $0x1f8] sm:$0xff]
    %v110 = vld [vmem:[#allocation5 + $0x200] sm:$0xff]
    %v111 = vld [vmem:[#allocation5 + $0x208] sm:$0xff]
    %v112 = vld [vmem:[#allocation5 + $0x210] sm:$0xff]
    %v113 = vld [vmem:[#allocation5 + $0x218] sm:$0xff]
    %v114 = vld [vmem:[#allocation5 + $0x220] sm:$0xff]
    %v115 = vld [vmem:[#allocation5 + $0x228] sm:$0xff]
    %v116 = vld [vmem:[#allocation5 + $0x230] sm:$0xff]
    %v117 = vld [vmem:[#allocation5 + $0x238] sm:$0xff]
    %v118 = vld [vmem:[#allocation5 + $0x240] sm:$0xff]
    %v119 = vld [vmem:[#allocation5 + $0x248] sm:$0xff]
    %v120 = vld [vmem:[#allocation5 + $0x250] sm:$0xff]
    %v121 = vld [vmem:[#allocation5 + $0x258] sm:$0xff]
    %v122 = vld [vmem:[#allocation5 + $0x260] sm:$0xff]
    %v123 = vld [vmem:[#allocation5 + $0x268] sm:$0xff]
    %v124 = vld [vmem:[#allocation5 + $0x270] sm:$0xff]
    %v125 = vld [vmem:[#allocation5 + $0x278] sm:$0xff]
    %v126 = vld [vmem:[#allocation5 + $0x280] sm:$0xff]
    %v127 = vld [vmem:[#allocation5 + $0x288] sm:$0xff]
    %v128 = vld [vmem:[#allocation5 + $0x290] sm:$0xff]
    %v129 = vld [vmem:[#allocation5 + $0x298] sm:$0xff]
    %v130 = vld [vmem:[#allocation5 + $0x2a0] sm:$0xff]
    %v131 = vld [vmem:[#allocation5 + $0x2a8] sm:$0xff]
    %v132 = vld [vmem:[#allocation5 + $0x2b0] sm:$0xff]
    %v133 = vld [vmem:[#allocation5 + $0x2b8] sm:$0xff]
    %v134 = vld [vmem:[#allocation5 + $0x2c0] sm:$0xff]
    %v135 = vld [vmem:[#allocation5 + $0x2c8] sm:$0xff]
    %v136 = vld [vmem:[#allocation5 + $0x2d0] sm:$0xff]
    %v137 = vld [vmem:[#allocation5 + $0x2d8] sm:$0xff]
    %v138 = vld [vmem:[#allocation5 + $0x2e0] sm:$0xff]
    %v139 = vld [vmem:[#allocation5 + $0x2e8] sm:$0xff]
    %v140 = vld [vmem:[#allocation5 + $0x2f0] sm:$0xff]
    %v141 = vld [vmem:[#allocation5 + $0x2f8] sm:$0xff]
    %144 = vst [vmem:[#allocation1] ss:$4 sm:$0xff] %v44
    %s145 = scalar_lea.vmem [#allocation1], 32
    %146 = vst [vmem:[%s145] ss:$4 sm:$0xff] %v45
    %v147 = vld.sshfl [vmem:[#allocation1] sm:$0xff pattern:$0x73625140]
    %v148 = vld.sshfl [vmem:[#allocation1 + $0x8] sm:$0xff pattern:$0x73625140]
    %v149 = vld.sshfl [vmem:[#allocation1 + $0x10] sm:$0xff pattern:$0x73625140]
    %v150 = vld.sshfl [vmem:[#allocation1 + $0x18] sm:$0xff pattern:$0x73625140]
    %v151 = vld.sshfl [vmem:[#allocation1 + $0x20] sm:$0xff pattern:$0x73625140]
    %v152 = vld.sshfl [vmem:[#allocation1 + $0x28] sm:$0xff pattern:$0x73625140]
    %v159 = vand.u32 %v61, 4294901760
    %160 = vmatpush.msra.mxu0 %v159
    %v161 = vand.u32 %v60, 4294901760
    %162 = vmatpush.msra.mxu0 %v161
    %v163 = vand.u32 %v59, 4294901760
    %164 = vmatpush.msra.mxu0 %v163
    %v165 = vand.u32 %v58, 4294901760
    %166 = vmatpush.msra.mxu0 %v165
    %v167 = vand.u32 %v57, 4294901760
    %168 = vmatpush.msra.mxu0 %v167
    %v169 = vand.u32 %v56, 4294901760
    %170 = vmatpush.msra.mxu0 %v169
    %v171 = vand.u32 %v55, 4294901760
    %172 = vmatpush.msra.mxu0 %v171
    %v173 = vand.u32 %v54, 4294901760
    %174 = vmatpush.msra.mxu0 %v173
    %v175 = vand.u32 %v53, 4294901760
    %176 = vmatpush.msra.mxu0 %v175
    %v177 = vand.u32 %v52, 4294901760
    %178 = vmatpush.msra.mxu0 %v177
    %v179 = vand.u32 %v51, 4294901760
    %180 = vmatpush.msra.mxu0 %v179
    %v181 = vand.u32 %v50, 4294901760
    %182 = vmatpush.msra.mxu0 %v181
    %v183 = vand.u32 %v49, 4294901760
    %184 = vmatpush.msra.mxu0 %v183
    %v185 = vand.u32 %v48, 4294901760
    %186 = vmatpush.msra.mxu0 %v185
    %v187 = vand.u32 %v47, 4294901760
    %188 = vmatpush.msra.mxu0 %v187
    %v189 = vand.u32 %v46, 4294901760
    %190 = vmatpush.msra.mxu0 %v189
    %v191 = vand.u32 %v147, 4294901760
    %v192 = vsub.f32 %v147, %v191
    %v193 = vand.u32 %v192, 4294901760
    %v194 = vsub.f32 %v192, %v193
    %v195 = vand.u32 %v194, 4294901760
    %196 = vmatmul.f32.gmra.mxu0 %v195
    %v197 = vpop.f32.mrf.mxu0
    %v198 = vadd.f32 0.0, %v197
    %199 = vdwg.mxu0
    %v200 = vand.u32 %v61, 4294901760
    %v201 = vsub.f32 %v61, %v200
    %v202 = vand.u32 %v201, 4294901760
    %v203 = vsub.f32 %v201, %v202
    %v204 = vand.u32 %v203, 4294901760
    %205 = vmatpush.msra.mxu0 %v204
    %v206 = vand.u32 %v60, 4294901760
    %v207 = vsub.f32 %v60, %v206
    %v208 = vand.u32 %v207, 4294901760
    %v209 = vsub.f32 %v207, %v208
    %v210 = vand.u32 %v209, 4294901760
    %211 = vmatpush.msra.mxu0 %v210
    %v212 = vand.u32 %v59, 4294901760
    %v213 = vsub.f32 %v59, %v212
    %v214 = vand.u32 %v213, 4294901760
    %v215 = vsub.f32 %v213, %v214
    %v216 = vand.u32 %v215, 4294901760
    %217 = vmatpush.msra.mxu0 %v216
    %v218 = vand.u32 %v58, 4294901760
    %v219 = vsub.f32 %v58, %v218
    %v220 = vand.u32 %v219, 4294901760
    %v221 = vsub.f32 %v219, %v220
    %v222 = vand.u32 %v221, 4294901760
    %223 = vmatpush.msra.mxu0 %v222
    %v224 = vand.u32 %v57, 4294901760
    %v225 = vsub.f32 %v57, %v224
    %v226 = vand.u32 %v225, 4294901760
    %v227 = vsub.f32 %v225, %v226
    %v228 = vand.u32 %v227, 4294901760
    %229 = vmatpush.msra.mxu0 %v228
    %v230 = vand.u32 %v56, 4294901760
    %v231 = vsub.f32 %v56, %v230
    %v232 = vand.u32 %v231, 4294901760
    %v233 = vsub.f32 %v231, %v232
    %v234 = vand.u32 %v233, 4294901760
    %235 = vmatpush.msra.mxu0 %v234
    %v236 = vand.u32 %v55, 4294901760
    %v237 = vsub.f32 %v55, %v236
    %v238 = vand.u32 %v237, 4294901760
    %v239 = vsub.f32 %v237, %v238
    %v240 = vand.u32 %v239, 4294901760
    %241 = vmatpush.msra.mxu0 %v240
    %v242 = vand.u32 %v54, 4294901760
    %v243 = vsub.f32 %v54, %v242
    %v244 = vand.u32 %v243, 4294901760
    %v245 = vsub.f32 %v243, %v244
    %v246 = vand.u32 %v245, 4294901760
    %247 = vmatpush.msra.mxu0 %v246
    %v248 = vand.u32 %v53, 4294901760
    %v249 = vsub.f32 %v53, %v248
    %v250 = vand.u32 %v249, 4294901760
    %v251 = vsub.f32 %v249, %v250
    %v252 = vand.u32 %v251, 4294901760
    %253 = vmatpush.msra.mxu0 %v252
    %v254 = vand.u32 %v52, 4294901760
    %v255 = vsub.f32 %v52, %v254
    %v256 = vand.u32 %v255, 4294901760
    %v257 = vsub.f32 %v255, %v256
    %v258 = vand.u32 %v257, 4294901760
    %259 = vmatpush.msra.mxu0 %v258
    %v260 = vand.u32 %v51, 4294901760
    %v261 = vsub.f32 %v51, %v260
    %v262 = vand.u32 %v261, 4294901760
    %v263 = vsub.f32 %v261, %v262
    %v264 = vand.u32 %v263, 4294901760
    %265 = vmatpush.msra.mxu0 %v264
    %v266 = vand.u32 %v50, 4294901760
    %v267 = vsub.f32 %v50, %v266
    %v268 = vand.u32 %v267, 4294901760
    %v269 = vsub.f32 %v267, %v268
    %v270 = vand.u32 %v269, 4294901760
    %271 = vmatpush.msra.mxu0 %v270
    %v272 = vand.u32 %v49, 4294901760
    %v273 = vsub.f32 %v49, %v272
    %v274 = vand.u32 %v273, 4294901760
    %v275 = vsub.f32 %v273, %v274
    %v276 = vand.u32 %v275, 4294901760
    %277 = vmatpush.msra.mxu0 %v276
    %v278 = vand.u32 %v48, 4294901760
    %v279 = vsub.f32 %v48, %v278
    %v280 = vand.u32 %v279, 4294901760
    %v281 = vsub.f32 %v279, %v280
    %v282 = vand.u32 %v281, 4294901760
    %283 = vmatpush.msra.mxu0 %v282
    %v284 = vand.u32 %v47, 4294901760
    %v285 = vsub.f32 %v47, %v284
    %v286 = vand.u32 %v285, 4294901760
    %v287 = vsub.f32 %v285, %v286
    %v288 = vand.u32 %v287, 4294901760
    %289 = vmatpush.msra.mxu0 %v288
    %v290 = vand.u32 %v46, 4294901760
    %v291 = vsub.f32 %v46, %v290
    %v292 = vand.u32 %v291, 4294901760
    %v293 = vsub.f32 %v291, %v292
    %v294 = vand.u32 %v293, 4294901760
    %295 = vmatpush.msra.mxu0 %v294
    %v296 = vand.u32 %v147, 4294901760
    %297 = vmatmul.f32.gmra.mxu0 %v296
    %v298 = vpop.f32.mrf.mxu0
    %v299 = vadd.f32 %v198, %v298
    %300 = vdwg.mxu0
    %v301 = vand.u32 %v61, 4294901760
    %v302 = vsub.f32 %v61, %v301
    %303 = vmatpush.msra.mxu0 %v302
    %v304 = vand.u32 %v60, 4294901760
    %v305 = vsub.f32 %v60, %v304
    %306 = vmatpush.msra.mxu0 %v305
    %v307 = vand.u32 %v59, 4294901760
    %v308 = vsub.f32 %v59, %v307
    %309 = vmatpush.msra.mxu0 %v308
    %v310 = vand.u32 %v58, 4294901760
    %v311 = vsub.f32 %v58, %v310
    %312 = vmatpush.msra.mxu0 %v311
    %v313 = vand.u32 %v57, 4294901760
    %v314 = vsub.f32 %v57, %v313
    %315 = vmatpush.msra.mxu0 %v314
    %v316 = vand.u32 %v56, 4294901760
    %v317 = vsub.f32 %v56, %v316
    %318 = vmatpush.msra.mxu0 %v317
    %v319 = vand.u32 %v55, 4294901760
    %v320 = vsub.f32 %v55, %v319
    %321 = vmatpush.msra.mxu0 %v320
    %v322 = vand.u32 %v54, 4294901760
    %v323 = vsub.f32 %v54, %v322
    %324 = vmatpush.msra.mxu0 %v323
    %v325 = vand.u32 %v53, 4294901760
    %v326 = vsub.f32 %v53, %v325
    %327 = vmatpush.msra.mxu0 %v326
    %v328 = vand.u32 %v52, 4294901760
    %v329 = vsub.f32 %v52, %v328
    %330 = vmatpush.msra.mxu0 %v329
    %v331 = vand.u32 %v51, 4294901760
    %v332 = vsub.f32 %v51, %v331
    %333 = vmatpush.msra.mxu0 %v332
    %v334 = vand.u32 %v50, 4294901760
    %v335 = vsub.f32 %v50, %v334
    %336 = vmatpush.msra.mxu0 %v335
    %v337 = vand.u32 %v49, 4294901760
    %v338 = vsub.f32 %v49, %v337
    %339 = vmatpush.msra.mxu0 %v338
    %v340 = vand.u32 %v48, 4294901760
    %v341 = vsub.f32 %v48, %v340
    %342 = vmatpush.msra.mxu0 %v341
    %v343 = vand.u32 %v47, 4294901760
    %v344 = vsub.f32 %v47, %v343
    %345 = vmatpush.msra.mxu0 %v344
    %v346 = vand.u32 %v46, 4294901760
    %v347 = vsub.f32 %v46, %v346
    %348 = vmatpush.msra.mxu0 %v347
    %v349 = vand.u32 %v147, 4294901760
    %v350 = vsub.f32 %v147, %v349
    %351 = vmatmul.f32.gmra.mxu0 %v350
    %v352 = vpop.f32.mrf.mxu0
    %v353 = vadd.f32 %v299, %v352
    %354 = vdwg.mxu0
    %v355 = vand.u32 %v61, 4294901760
    %356 = vmatpush.msra.mxu0 %v355
    %v357 = vand.u32 %v60, 4294901760
    %358 = vmatpush.msra.mxu0 %v357
    %v359 = vand.u32 %v59, 4294901760
    %360 = vmatpush.msra.mxu0 %v359
    %v361 = vand.u32 %v58, 4294901760
    %362 = vmatpush.msra.mxu0 %v361
    %v363 = vand.u32 %v57, 4294901760
    %364 = vmatpush.msra.mxu0 %v363
    %v365 = vand.u32 %v56, 4294901760
    %366 = vmatpush.msra.mxu0 %v365
    %v367 = vand.u32 %v55, 4294901760
    %368 = vmatpush.msra.mxu0 %v367
    %v369 = vand.u32 %v54, 4294901760
    %370 = vmatpush.msra.mxu0 %v369
    %v371 = vand.u32 %v53, 4294901760
    %372 = vmatpush.msra.mxu0 %v371
    %v373 = vand.u32 %v52, 4294901760
    %374 = vmatpush.msra.mxu0 %v373
    %v375 = vand.u32 %v51, 4294901760
    %376 = vmatpush.msra.mxu0 %v375
    %v377 = vand.u32 %v50, 4294901760
    %378 = vmatpush.msra.mxu0 %v377
    %v379 = vand.u32 %v49, 4294901760
    %380 = vmatpush.msra.mxu0 %v379
    %v381 = vand.u32 %v48, 4294901760
    %382 = vmatpush.msra.mxu0 %v381
    %v383 = vand.u32 %v47, 4294901760
    %384 = vmatpush.msra.mxu0 %v383
    %v385 = vand.u32 %v46, 4294901760
    %386 = vmatpush.msra.mxu0 %v385
    %v387 = vand.u32 %v147, 4294901760
    %v388 = vsub.f32 %v147, %v387
    %v389 = vand.u32 %v388, 4294901760
    %390 = vmatmul.f32.gmra.mxu0 %v389
    %v391 = vpop.f32.mrf.mxu0
    %v392 = vadd.f32 %v353, %v391
    %393 = vdwg.mxu0
    %v394 = vand.u32 %v61, 4294901760
    %v395 = vsub.f32 %v61, %v394
    %v396 = vand.u32 %v395, 4294901760
    %397 = vmatpush.msra.mxu0 %v396
    %v398 = vand.u32 %v60, 4294901760
    %v399 = vsub.f32 %v60, %v398
    %v400 = vand.u32 %v399, 4294901760
    %401 = vmatpush.msra.mxu0 %v400
    %v402 = vand.u32 %v59, 4294901760
    %v403 = vsub.f32 %v59, %v402
    %v404 = vand.u32 %v403, 4294901760
    %405 = vmatpush.msra.mxu0 %v404
    %v406 = vand.u32 %v58, 4294901760
    %v407 = vsub.f32 %v58, %v406
    %v408 = vand.u32 %v407, 4294901760
    %409 = vmatpush.msra.mxu0 %v408
    %v410 = vand.u32 %v57, 4294901760
    %v411 = vsub.f32 %v57, %v410
    %v412 = vand.u32 %v411, 4294901760
    %413 = vmatpush.msra.mxu0 %v412
    %v414 = vand.u32 %v56, 4294901760
    %v415 = vsub.f32 %v56, %v414
    %v416 = vand.u32 %v415, 4294901760
    %417 = vmatpush.msra.mxu0 %v416
    %v418 = vand.u32 %v55, 4294901760
    %v419 = vsub.f32 %v55, %v418
    %v420 = vand.u32 %v419, 4294901760
    %421 = vmatpush.msra.mxu0 %v420
    %v422 = vand.u32 %v54, 4294901760
    %v423 = vsub.f32 %v54, %v422
    %v424 = vand.u32 %v423, 4294901760
    %425 = vmatpush.msra.mxu0 %v424
    %v426 = vand.u32 %v53, 4294901760
    %v427 = vsub.f32 %v53, %v426
    %v428 = vand.u32 %v427, 4294901760
    %429 = vmatpush.msra.mxu0 %v428
    %v430 = vand.u32 %v52, 4294901760
    %v431 = vsub.f32 %v52, %v430
    %v432 = vand.u32 %v431, 4294901760
    %433 = vmatpush.msra.mxu0 %v432
    %v434 = vand.u32 %v51, 4294901760
    %v435 = vsub.f32 %v51, %v434
    %v436 = vand.u32 %v435, 4294901760
    %437 = vmatpush.msra.mxu0 %v436
    %v438 = vand.u32 %v50, 4294901760
    %v439 = vsub.f32 %v50, %v438
    %v440 = vand.u32 %v439, 4294901760
    %441 = vmatpush.msra.mxu0 %v440
    %v442 = vand.u32 %v49, 4294901760
    %v443 = vsub.f32 %v49, %v442
    %v444 = vand.u32 %v443, 4294901760
    %445 = vmatpush.msra.mxu0 %v444
    %v446 = vand.u32 %v48, 4294901760
    %v447 = vsub.f32 %v48, %v446
    %v448 = vand.u32 %v447, 4294901760
    %449 = vmatpush.msra.mxu0 %v448
    %v450 = vand.u32 %v47, 4294901760
    %v451 = vsub.f32 %v47, %v450
    %v452 = vand.u32 %v451, 4294901760
    %453 = vmatpush.msra.mxu0 %v452
    %v454 = vand.u32 %v46, 4294901760
    %v455 = vsub.f32 %v46, %v454
    %v456 = vand.u32 %v455, 4294901760
    %457 = vmatpush.msra.mxu0 %v456
    %v458 = vand.u32 %v147, 4294901760
    %459 = vmatmul.f32.gmra.mxu0 %v458
    %v460 = vpop.f32.mrf.mxu0
    %v461 = vadd.f32 %v392, %v460
    %462 = vdwg.mxu0
    %v463 = vand.u32 %v61, 4294901760
    %464 = vmatpush.msra.mxu0 %v463
    %v465 = vand.u32 %v60, 4294901760
    %466 = vmatpush.msra.mxu0 %v465
    %v467 = vand.u32 %v59, 4294901760
    %468 = vmatpush.msra.mxu0 %v467
    %v469 = vand.u32 %v58, 4294901760
    %470 = vmatpush.msra.mxu0 %v469
    %v471 = vand.u32 %v57, 4294901760
    %472 = vmatpush.msra.mxu0 %v471
    %v473 = vand.u32 %v56, 4294901760
    %474 = vmatpush.msra.mxu0 %v473
    %v475 = vand.u32 %v55, 4294901760
    %476 = vmatpush.msra.mxu0 %v475
    %v477 = vand.u32 %v54, 4294901760
    %478 = vmatpush.msra.mxu0 %v477
    %v479 = vand.u32 %v53, 4294901760
    %480 = vmatpush.msra.mxu0 %v479
    %v481 = vand.u32 %v52, 4294901760
    %482 = vmatpush.msra.mxu0 %v481
    %v483 = vand.u32 %v51, 4294901760
    %484 = vmatpush.msra.mxu0 %v483
    %v485 = vand.u32 %v50, 4294901760
    %486 = vmatpush.msra.mxu0 %v485
    %v487 = vand.u32 %v49, 4294901760
    %488 = vmatpush.msra.mxu0 %v487
    %v489 = vand.u32 %v48, 4294901760
    %490 = vmatpush.msra.mxu0 %v489
    %v491 = vand.u32 %v47, 4294901760
    %492 = vmatpush.msra.mxu0 %v491
    %v493 = vand.u32 %v46, 4294901760
    %494 = vmatpush.msra.mxu0 %v493
    %v495 = vand.u32 %v147, 4294901760
    %496 = vmatmul.f32.gmra.mxu0 %v495
    %v497 = vpop.f32.mrf.mxu0
    %v498 = vadd.f32 %v461, %v497
    %499 = vdwg.mxu0
    %v500 = vand.u32 %v77, 4294901760
    %501 = vmatpush.msra.mxu0 %v500
    %v502 = vand.u32 %v76, 4294901760
    %503 = vmatpush.msra.mxu0 %v502
    %v504 = vand.u32 %v75, 4294901760
    %505 = vmatpush.msra.mxu0 %v504
    %v506 = vand.u32 %v74, 4294901760
    %507 = vmatpush.msra.mxu0 %v506
    %v508 = vand.u32 %v73, 4294901760
    %509 = vmatpush.msra.mxu0 %v508
    %v510 = vand.u32 %v72, 4294901760
    %511 = vmatpush.msra.mxu0 %v510
    %v512 = vand.u32 %v71, 4294901760
    %513 = vmatpush.msra.mxu0 %v512
    %v514 = vand.u32 %v70, 4294901760
    %515 = vmatpush.msra.mxu0 %v514
    %v516 = vand.u32 %v69, 4294901760
    %517 = vmatpush.msra.mxu0 %v516
    %v518 = vand.u32 %v68, 4294901760
    %519 = vmatpush.msra.mxu0 %v518
    %v520 = vand.u32 %v67, 4294901760
    %521 = vmatpush.msra.mxu0 %v520
    %v522 = vand.u32 %v66, 4294901760
    %523 = vmatpush.msra.mxu0 %v522
    %v524 = vand.u32 %v65, 4294901760
    %525 = vmatpush.msra.mxu0 %v524
    %v526 = vand.u32 %v64, 4294901760
    %527 = vmatpush.msra.mxu0 %v526
    %v528 = vand.u32 %v63, 4294901760
    %529 = vmatpush.msra.mxu0 %v528
    %v530 = vand.u32 %v62, 4294901760
    %531 = vmatpush.msra.mxu0 %v530
    %v532 = vand.u32 %v148, 4294901760
    %v533 = vsub.f32 %v148, %v532
    %v534 = vand.u32 %v533, 4294901760
    %v535 = vsub.f32 %v533, %v534
    %v536 = vand.u32 %v535, 4294901760
    %537 = vmatmul.f32.gmra.mxu0 %v536
    %v538 = vpop.f32.mrf.mxu0
    %v539 = vadd.f32 %v498, %v538
    %540 = vdwg.mxu0
    %v541 = vand.u32 %v77, 4294901760
    %v542 = vsub.f32 %v77, %v541
    %v543 = vand.u32 %v542, 4294901760
    %v544 = vsub.f32 %v542, %v543
    %v545 = vand.u32 %v544, 4294901760
    %546 = vmatpush.msra.mxu0 %v545
    %v547 = vand.u32 %v76, 4294901760
    %v548 = vsub.f32 %v76, %v547
    %v549 = vand.u32 %v548, 4294901760
    %v550 = vsub.f32 %v548, %v549
    %v551 = vand.u32 %v550, 4294901760
    %552 = vmatpush.msra.mxu0 %v551
    %v553 = vand.u32 %v75, 4294901760
    %v554 = vsub.f32 %v75, %v553
    %v555 = vand.u32 %v554, 4294901760
    %v556 = vsub.f32 %v554, %v555
    %v557 = vand.u32 %v556, 4294901760
    %558 = vmatpush.msra.mxu0 %v557
    %v559 = vand.u32 %v74, 4294901760
    %v560 = vsub.f32 %v74, %v559
    %v561 = vand.u32 %v560, 4294901760
    %v562 = vsub.f32 %v560, %v561
    %v563 = vand.u32 %v562, 4294901760
    %564 = vmatpush.msra.mxu0 %v563
    %v565 = vand.u32 %v73, 4294901760
    %v566 = vsub.f32 %v73, %v565
    %v567 = vand.u32 %v566, 4294901760
    %v568 = vsub.f32 %v566, %v567
    %v569 = vand.u32 %v568, 4294901760
    %570 = vmatpush.msra.mxu0 %v569
    %v571 = vand.u32 %v72, 4294901760
    %v572 = vsub.f32 %v72, %v571
    %v573 = vand.u32 %v572, 4294901760
    %v574 = vsub.f32 %v572, %v573
    %v575 = vand.u32 %v574, 4294901760
    %576 = vmatpush.msra.mxu0 %v575
    %v577 = vand.u32 %v71, 4294901760
    %v578 = vsub.f32 %v71, %v577
    %v579 = vand.u32 %v578, 4294901760
    %v580 = vsub.f32 %v578, %v579
    %v581 = vand.u32 %v580, 4294901760
    %582 = vmatpush.msra.mxu0 %v581
    %v583 = vand.u32 %v70, 4294901760
    %v584 = vsub.f32 %v70, %v583
    %v585 = vand.u32 %v584, 4294901760
    %v586 = vsub.f32 %v584, %v585
    %v587 = vand.u32 %v586, 4294901760
    %588 = vmatpush.msra.mxu0 %v587
    %v589 = vand.u32 %v69, 4294901760
    %v590 = vsub.f32 %v69, %v589
    %v591 = vand.u32 %v590, 4294901760
    %v592 = vsub.f32 %v590, %v591
    %v593 = vand.u32 %v592, 4294901760
    %594 = vmatpush.msra.mxu0 %v593
    %v595 = vand.u32 %v68, 4294901760
    %v596 = vsub.f32 %v68, %v595
    %v597 = vand.u32 %v596, 4294901760
    %v598 = vsub.f32 %v596, %v597
    %v599 = vand.u32 %v598, 4294901760
    %600 = vmatpush.msra.mxu0 %v599
    %v601 = vand.u32 %v67, 4294901760
    %v602 = vsub.f32 %v67, %v601
    %v603 = vand.u32 %v602, 4294901760
    %v604 = vsub.f32 %v602, %v603
    %v605 = vand.u32 %v604, 4294901760
    %606 = vmatpush.msra.mxu0 %v605
    %v607 = vand.u32 %v66, 4294901760
    %v608 = vsub.f32 %v66, %v607
    %v609 = vand.u32 %v608, 4294901760
    %v610 = vsub.f32 %v608, %v609
    %v611 = vand.u32 %v610, 4294901760
    %612 = vmatpush.msra.mxu0 %v611
    %v613 = vand.u32 %v65, 4294901760
    %v614 = vsub.f32 %v65, %v613
    %v615 = vand.u32 %v614, 4294901760
    %v616 = vsub.f32 %v614, %v615
    %v617 = vand.u32 %v616, 4294901760
    %618 = vmatpush.msra.mxu0 %v617
    %v619 = vand.u32 %v64, 4294901760
    %v620 = vsub.f32 %v64, %v619
    %v621 = vand.u32 %v620, 4294901760
    %v622 = vsub.f32 %v620, %v621
    %v623 = vand.u32 %v622, 4294901760
    %624 = vmatpush.msra.mxu0 %v623
    %v625 = vand.u32 %v63, 4294901760
    %v626 = vsub.f32 %v63, %v625
    %v627 = vand.u32 %v626, 4294901760
    %v628 = vsub.f32 %v626, %v627
    %v629 = vand.u32 %v628, 4294901760
    %630 = vmatpush.msra.mxu0 %v629
    %v631 = vand.u32 %v62, 4294901760
    %v632 = vsub.f32 %v62, %v631
    %v633 = vand.u32 %v632, 4294901760
    %v634 = vsub.f32 %v632, %v633
    %v635 = vand.u32 %v634, 4294901760
    %636 = vmatpush.msra.mxu0 %v635
    %v637 = vand.u32 %v148, 4294901760
    %638 = vmatmul.f32.gmra.mxu0 %v637
    %v639 = vpop.f32.mrf.mxu0
    %v640 = vadd.f32 %v539, %v639
    %641 = vdwg.mxu0
    %v642 = vand.u32 %v77, 4294901760
    %v643 = vsub.f32 %v77, %v642
    %644 = vmatpush.msra.mxu0 %v643
    %v645 = vand.u32 %v76, 4294901760
    %v646 = vsub.f32 %v76, %v645
    %647 = vmatpush.msra.mxu0 %v646
    %v648 = vand.u32 %v75, 4294901760
    %v649 = vsub.f32 %v75, %v648
    %650 = vmatpush.msra.mxu0 %v649
    %v651 = vand.u32 %v74, 4294901760
    %v652 = vsub.f32 %v74, %v651
    %653 = vmatpush.msra.mxu0 %v652
    %v654 = vand.u32 %v73, 4294901760
    %v655 = vsub.f32 %v73, %v654
    %656 = vmatpush.msra.mxu0 %v655
    %v657 = vand.u32 %v72, 4294901760
    %v658 = vsub.f32 %v72, %v657
    %659 = vmatpush.msra.mxu0 %v658
    %v660 = vand.u32 %v71, 4294901760
    %v661 = vsub.f32 %v71, %v660
    %662 = vmatpush.msra.mxu0 %v661
    %v663 = vand.u32 %v70, 4294901760
    %v664 = vsub.f32 %v70, %v663
    %665 = vmatpush.msra.mxu0 %v664
    %v666 = vand.u32 %v69, 4294901760
    %v667 = vsub.f32 %v69, %v666
    %668 = vmatpush.msra.mxu0 %v667
    %v669 = vand.u32 %v68, 4294901760
    %v670 = vsub.f32 %v68, %v669
    %671 = vmatpush.msra.mxu0 %v670
    %v672 = vand.u32 %v67, 4294901760
    %v673 = vsub.f32 %v67, %v672
    %674 = vmatpush.msra.mxu0 %v673
    %v675 = vand.u32 %v66, 4294901760
    %v676 = vsub.f32 %v66, %v675
    %677 = vmatpush.msra.mxu0 %v676
    %v678 = vand.u32 %v65, 4294901760
    %v679 = vsub.f32 %v65, %v678
    %680 = vmatpush.msra.mxu0 %v679
    %v681 = vand.u32 %v64, 4294901760
    %v682 = vsub.f32 %v64, %v681
    %683 = vmatpush.msra.mxu0 %v682
    %v684 = vand.u32 %v63, 4294901760
    %v685 = vsub.f32 %v63, %v684
    %686 = vmatpush.msra.mxu0 %v685
    %v687 = vand.u32 %v62, 4294901760
    %v688 = vsub.f32 %v62, %v687
    %689 = vmatpush.msra.mxu0 %v688
    %v690 = vand.u32 %v148, 4294901760
    %v691 = vsub.f32 %v148, %v690
    %692 = vmatmul.f32.gmra.mxu0 %v691
    %v693 = vpop.f32.mrf.mxu0
    %v694 = vadd.f32 %v640, %v693
    %695 = vdwg.mxu0
    %v696 = vand.u32 %v77, 4294901760
    %697 = vmatpush.msra.mxu0 %v696
    %v698 = vand.u32 %v76, 4294901760
    %699 = vmatpush.msra.mxu0 %v698
    %v700 = vand.u32 %v75, 4294901760
    %701 = vmatpush.msra.mxu0 %v700
    %v702 = vand.u32 %v74, 4294901760
    %703 = vmatpush.msra.mxu0 %v702
    %v704 = vand.u32 %v73, 4294901760
    %705 = vmatpush.msra.mxu0 %v704
    %v706 = vand.u32 %v72, 4294901760
    %707 = vmatpush.msra.mxu0 %v706
    %v708 = vand.u32 %v71, 4294901760
    %709 = vmatpush.msra.mxu0 %v708
    %v710 = vand.u32 %v70, 4294901760
    %711 = vmatpush.msra.mxu0 %v710
    %v712 = vand.u32 %v69, 4294901760
    %713 = vmatpush.msra.mxu0 %v712
    %v714 = vand.u32 %v68, 4294901760
    %715 = vmatpush.msra.mxu0 %v714
    %v716 = vand.u32 %v67, 4294901760
    %717 = vmatpush.msra.mxu0 %v716
    %v718 = vand.u32 %v66, 4294901760
    %719 = vmatpush.msra.mxu0 %v718
    %v720 = vand.u32 %v65, 4294901760
    %721 = vmatpush.msra.mxu0 %v720
    %v722 = vand.u32 %v64, 4294901760
    %723 = vmatpush.msra.mxu0 %v722
    %v724 = vand.u32 %v63, 4294901760
    %725 = vmatpush.msra.mxu0 %v724
    %v726 = vand.u32 %v62, 4294901760
    %727 = vmatpush.msra.mxu0 %v726
    %v728 = vand.u32 %v148, 4294901760
    %v729 = vsub.f32 %v148, %v728
    %v730 = vand.u32 %v729, 4294901760
    %731 = vmatmul.f32.gmra.mxu0 %v730
    %v732 = vpop.f32.mrf.mxu0
    %v733 = vadd.f32 %v694, %v732
    %734 = vdwg.mxu0
    %v735 = vand.u32 %v77, 4294901760
    %v736 = vsub.f32 %v77, %v735
    %v737 = vand.u32 %v736, 4294901760
    %738 = vmatpush.msra.mxu0 %v737
    %v739 = vand.u32 %v76, 4294901760
    %v740 = vsub.f32 %v76, %v739
    %v741 = vand.u32 %v740, 4294901760
    %742 = vmatpush.msra.mxu0 %v741
    %v743 = vand.u32 %v75, 4294901760
    %v744 = vsub.f32 %v75, %v743
    %v745 = vand.u32 %v744, 4294901760
    %746 = vmatpush.msra.mxu0 %v745
    %v747 = vand.u32 %v74, 4294901760
    %v748 = vsub.f32 %v74, %v747
    %v749 = vand.u32 %v748, 4294901760
    %750 = vmatpush.msra.mxu0 %v749
    %v751 = vand.u32 %v73, 4294901760
    %v752 = vsub.f32 %v73, %v751
    %v753 = vand.u32 %v752, 4294901760
    %754 = vmatpush.msra.mxu0 %v753
    %v755 = vand.u32 %v72, 4294901760
    %v756 = vsub.f32 %v72, %v755
    %v757 = vand.u32 %v756, 4294901760
    %758 = vmatpush.msra.mxu0 %v757
    %v759 = vand.u32 %v71, 4294901760
    %v760 = vsub.f32 %v71, %v759
    %v761 = vand.u32 %v760, 4294901760
    %762 = vmatpush.msra.mxu0 %v761
    %v763 = vand.u32 %v70, 4294901760
    %v764 = vsub.f32 %v70, %v763
    %v765 = vand.u32 %v764, 4294901760
    %766 = vmatpush.msra.mxu0 %v765
    %v767 = vand.u32 %v69, 4294901760
    %v768 = vsub.f32 %v69, %v767
    %v769 = vand.u32 %v768, 4294901760
    %770 = vmatpush.msra.mxu0 %v769
    %v771 = vand.u32 %v68, 4294901760
    %v772 = vsub.f32 %v68, %v771
    %v773 = vand.u32 %v772, 4294901760
    %774 = vmatpush.msra.mxu0 %v773
    %v775 = vand.u32 %v67, 4294901760
    %v776 = vsub.f32 %v67, %v775
    %v777 = vand.u32 %v776, 4294901760
    %778 = vmatpush.msra.mxu0 %v777
    %v779 = vand.u32 %v66, 4294901760
    %v780 = vsub.f32 %v66, %v779
    %v781 = vand.u32 %v780, 4294901760
    %782 = vmatpush.msra.mxu0 %v781
    %v783 = vand.u32 %v65, 4294901760
    %v784 = vsub.f32 %v65, %v783
    %v785 = vand.u32 %v784, 4294901760
    %786 = vmatpush.msra.mxu0 %v785
    %v787 = vand.u32 %v64, 4294901760
    %v788 = vsub.f32 %v64, %v787
    %v789 = vand.u32 %v788, 4294901760
    %790 = vmatpush.msra.mxu0 %v789
    %v791 = vand.u32 %v63, 4294901760
    %v792 = vsub.f32 %v63, %v791
    %v793 = vand.u32 %v792, 4294901760
    %794 = vmatpush.msra.mxu0 %v793
    %v795 = vand.u32 %v62, 4294901760
    %v796 = vsub.f32 %v62, %v795
    %v797 = vand.u32 %v796, 4294901760
    %798 = vmatpush.msra.mxu0 %v797
    %v799 = vand.u32 %v148, 4294901760
    %800 = vmatmul.f32.gmra.mxu0 %v799
    %v801 = vpop.f32.mrf.mxu0
    %v802 = vadd.f32 %v733, %v801
    %803 = vdwg.mxu0
    %v804 = vand.u32 %v77, 4294901760
    %805 = vmatpush.msra.mxu0 %v804
    %v806 = vand.u32 %v76, 4294901760
    %807 = vmatpush.msra.mxu0 %v806
    %v808 = vand.u32 %v75, 4294901760
    %809 = vmatpush.msra.mxu0 %v808
    %v810 = vand.u32 %v74, 4294901760
    %811 = vmatpush.msra.mxu0 %v810
    %v812 = vand.u32 %v73, 4294901760
    %813 = vmatpush.msra.mxu0 %v812
    %v814 = vand.u32 %v72, 4294901760
    %815 = vmatpush.msra.mxu0 %v814
    %v816 = vand.u32 %v71, 4294901760
    %817 = vmatpush.msra.mxu0 %v816
    %v818 = vand.u32 %v70, 4294901760
    %819 = vmatpush.msra.mxu0 %v818
    %v820 = vand.u32 %v69, 4294901760
    %821 = vmatpush.msra.mxu0 %v820
    %v822 = vand.u32 %v68, 4294901760
    %823 = vmatpush.msra.mxu0 %v822
    %v824 = vand.u32 %v67, 4294901760
    %825 = vmatpush.msra.mxu0 %v824
    %v826 = vand.u32 %v66, 4294901760
    %827 = vmatpush.msra.mxu0 %v826
    %v828 = vand.u32 %v65, 4294901760
    %829 = vmatpush.msra.mxu0 %v828
    %v830 = vand.u32 %v64, 4294901760
    %831 = vmatpush.msra.mxu0 %v830
    %v832 = vand.u32 %v63, 4294901760
    %833 = vmatpush.msra.mxu0 %v832
    %v834 = vand.u32 %v62, 4294901760
    %835 = vmatpush.msra.mxu0 %v834
    %v836 = vand.u32 %v148, 4294901760
    %837 = vmatmul.f32.gmra.mxu0 %v836
    %v838 = vpop.f32.mrf.mxu0
    %v839 = vadd.f32 %v802, %v838
    %840 = vdwg.mxu0
    %v841 = vand.u32 %v93, 4294901760
    %842 = vmatpush.msra.mxu0 %v841
    %v843 = vand.u32 %v92, 4294901760
    %844 = vmatpush.msra.mxu0 %v843
    %v845 = vand.u32 %v91, 4294901760
    %846 = vmatpush.msra.mxu0 %v845
    %v847 = vand.u32 %v90, 4294901760
    %848 = vmatpush.msra.mxu0 %v847
    %v849 = vand.u32 %v89, 4294901760
    %850 = vmatpush.msra.mxu0 %v849
    %v851 = vand.u32 %v88, 4294901760
    %852 = vmatpush.msra.mxu0 %v851
    %v853 = vand.u32 %v87, 4294901760
    %854 = vmatpush.msra.mxu0 %v853
    %v855 = vand.u32 %v86, 4294901760
    %856 = vmatpush.msra.mxu0 %v855
    %v857 = vand.u32 %v85, 4294901760
    %858 = vmatpush.msra.mxu0 %v857
    %v859 = vand.u32 %v84, 4294901760
    %860 = vmatpush.msra.mxu0 %v859
    %v861 = vand.u32 %v83, 4294901760
    %862 = vmatpush.msra.mxu0 %v861
    %v863 = vand.u32 %v82, 4294901760
    %864 = vmatpush.msra.mxu0 %v863
    %v865 = vand.u32 %v81, 4294901760
    %866 = vmatpush.msra.mxu0 %v865
    %v867 = vand.u32 %v80, 4294901760
    %868 = vmatpush.msra.mxu0 %v867
    %v869 = vand.u32 %v79, 4294901760
    %870 = vmatpush.msra.mxu0 %v869
    %v871 = vand.u32 %v78, 4294901760
    %872 = vmatpush.msra.mxu0 %v871
    %v873 = vand.u32 %v149, 4294901760
    %v874 = vsub.f32 %v149, %v873
    %v875 = vand.u32 %v874, 4294901760
    %v876 = vsub.f32 %v874, %v875
    %v877 = vand.u32 %v876, 4294901760
    %878 = vmatmul.f32.gmra.mxu0 %v877
    %v879 = vpop.f32.mrf.mxu0
    %v880 = vadd.f32 %v839, %v879
    %881 = vdwg.mxu0
    %v882 = vand.u32 %v93, 4294901760
    %v883 = vsub.f32 %v93, %v882
    %v884 = vand.u32 %v883, 4294901760
    %v885 = vsub.f32 %v883, %v884
    %v886 = vand.u32 %v885, 4294901760
    %887 = vmatpush.msra.mxu0 %v886
    %v888 = vand.u32 %v92, 4294901760
    %v889 = vsub.f32 %v92, %v888
    %v890 = vand.u32 %v889, 4294901760
    %v891 = vsub.f32 %v889, %v890
    %v892 = vand.u32 %v891, 4294901760
    %893 = vmatpush.msra.mxu0 %v892
    %v894 = vand.u32 %v91, 4294901760
    %v895 = vsub.f32 %v91, %v894
    %v896 = vand.u32 %v895, 4294901760
    %v897 = vsub.f32 %v895, %v896
    %v898 = vand.u32 %v897, 4294901760
    %899 = vmatpush.msra.mxu0 %v898
    %v900 = vand.u32 %v90, 4294901760
    %v901 = vsub.f32 %v90, %v900
    %v902 = vand.u32 %v901, 4294901760
    %v903 = vsub.f32 %v901, %v902
    %v904 = vand.u32 %v903, 4294901760
    %905 = vmatpush.msra.mxu0 %v904
    %v906 = vand.u32 %v89, 4294901760
    %v907 = vsub.f32 %v89, %v906
    %v908 = vand.u32 %v907, 4294901760
    %v909 = vsub.f32 %v907, %v908
    %v910 = vand.u32 %v909, 4294901760
    %911 = vmatpush.msra.mxu0 %v910
    %v912 = vand.u32 %v88, 4294901760
    %v913 = vsub.f32 %v88, %v912
    %v914 = vand.u32 %v913, 4294901760
    %v915 = vsub.f32 %v913, %v914
    %v916 = vand.u32 %v915, 4294901760
    %917 = vmatpush.msra.mxu0 %v916
    %v918 = vand.u32 %v87, 4294901760
    %v919 = vsub.f32 %v87, %v918
    %v920 = vand.u32 %v919, 4294901760
    %v921 = vsub.f32 %v919, %v920
    %v922 = vand.u32 %v921, 4294901760
    %923 = vmatpush.msra.mxu0 %v922
    %v924 = vand.u32 %v86, 4294901760
    %v925 = vsub.f32 %v86, %v924
    %v926 = vand.u32 %v925, 4294901760
    %v927 = vsub.f32 %v925, %v926
    %v928 = vand.u32 %v927, 4294901760
    %929 = vmatpush.msra.mxu0 %v928
    %v930 = vand.u32 %v85, 4294901760
    %v931 = vsub.f32 %v85, %v930
    %v932 = vand.u32 %v931, 4294901760
    %v933 = vsub.f32 %v931, %v932
    %v934 = vand.u32 %v933, 4294901760
    %935 = vmatpush.msra.mxu0 %v934
    %v936 = vand.u32 %v84, 4294901760
    %v937 = vsub.f32 %v84, %v936
    %v938 = vand.u32 %v937, 4294901760
    %v939 = vsub.f32 %v937, %v938
    %v940 = vand.u32 %v939, 4294901760
    %941 = vmatpush.msra.mxu0 %v940
    %v942 = vand.u32 %v83, 4294901760
    %v943 = vsub.f32 %v83, %v942
    %v944 = vand.u32 %v943, 4294901760
    %v945 = vsub.f32 %v943, %v944
    %v946 = vand.u32 %v945, 4294901760
    %947 = vmatpush.msra.mxu0 %v946
    %v948 = vand.u32 %v82, 4294901760
    %v949 = vsub.f32 %v82, %v948
    %v950 = vand.u32 %v949, 4294901760
    %v951 = vsub.f32 %v949, %v950
    %v952 = vand.u32 %v951, 4294901760
    %953 = vmatpush.msra.mxu0 %v952
    %v954 = vand.u32 %v81, 4294901760
    %v955 = vsub.f32 %v81, %v954
    %v956 = vand.u32 %v955, 4294901760
    %v957 = vsub.f32 %v955, %v956
    %v958 = vand.u32 %v957, 4294901760
    %959 = vmatpush.msra.mxu0 %v958
    %v960 = vand.u32 %v80, 4294901760
    %v961 = vsub.f32 %v80, %v960
    %v962 = vand.u32 %v961, 4294901760
    %v963 = vsub.f32 %v961, %v962
    %v964 = vand.u32 %v963, 4294901760
    %965 = vmatpush.msra.mxu0 %v964
    %v966 = vand.u32 %v79, 4294901760
    %v967 = vsub.f32 %v79, %v966
    %v968 = vand.u32 %v967, 4294901760
    %v969 = vsub.f32 %v967, %v968
    %v970 = vand.u32 %v969, 4294901760
    %971 = vmatpush.msra.mxu0 %v970
    %v972 = vand.u32 %v78, 4294901760
    %v973 = vsub.f32 %v78, %v972
    %v974 = vand.u32 %v973, 4294901760
    %v975 = vsub.f32 %v973, %v974
    %v976 = vand.u32 %v975, 4294901760
    %977 = vmatpush.msra.mxu0 %v976
    %v978 = vand.u32 %v149, 4294901760
    %979 = vmatmul.f32.gmra.mxu0 %v978
    %v980 = vpop.f32.mrf.mxu0
    %v981 = vadd.f32 %v880, %v980
    %982 = vdwg.mxu0
    %v983 = vand.u32 %v93, 4294901760
    %v984 = vsub.f32 %v93, %v983
    %985 = vmatpush.msra.mxu0 %v984
    %v986 = vand.u32 %v92, 4294901760
    %v987 = vsub.f32 %v92, %v986
    %988 = vmatpush.msra.mxu0 %v987
    %v989 = vand.u32 %v91, 4294901760
    %v990 = vsub.f32 %v91, %v989
    %991 = vmatpush.msra.mxu0 %v990
    %v992 = vand.u32 %v90, 4294901760
    %v993 = vsub.f32 %v90, %v992
    %994 = vmatpush.msra.mxu0 %v993
    %v995 = vand.u32 %v89, 4294901760
    %v996 = vsub.f32 %v89, %v995
    %997 = vmatpush.msra.mxu0 %v996
    %v998 = vand.u32 %v88, 4294901760
    %v999 = vsub.f32 %v88, %v998
    %1000 = vmatpush.msra.mxu0 %v999
    %v1001 = vand.u32 %v87, 4294901760
    %v1002 = vsub.f32 %v87, %v1001
    %1003 = vmatpush.msra.mxu0 %v1002
    %v1004 = vand.u32 %v86, 4294901760
    %v1005 = vsub.f32 %v86, %v1004
    %1006 = vmatpush.msra.mxu0 %v1005
    %v1007 = vand.u32 %v85, 4294901760
    %v1008 = vsub.f32 %v85, %v1007
    %1009 = vmatpush.msra.mxu0 %v1008
    %v1010 = vand.u32 %v84, 4294901760
    %v1011 = vsub.f32 %v84, %v1010
    %1012 = vmatpush.msra.mxu0 %v1011
    %v1013 = vand.u32 %v83, 4294901760
    %v1014 = vsub.f32 %v83, %v1013
    %1015 = vmatpush.msra.mxu0 %v1014
    %v1016 = vand.u32 %v82, 4294901760
    %v1017 = vsub.f32 %v82, %v1016
    %1018 = vmatpush.msra.mxu0 %v1017
    %v1019 = vand.u32 %v81, 4294901760
    %v1020 = vsub.f32 %v81, %v1019
    %1021 = vmatpush.msra.mxu0 %v1020
    %v1022 = vand.u32 %v80, 4294901760
    %v1023 = vsub.f32 %v80, %v1022
    %1024 = vmatpush.msra.mxu0 %v1023
    %v1025 = vand.u32 %v79, 4294901760
    %v1026 = vsub.f32 %v79, %v1025
    %1027 = vmatpush.msra.mxu0 %v1026
    %v1028 = vand.u32 %v78, 4294901760
    %v1029 = vsub.f32 %v78, %v1028
    %1030 = vmatpush.msra.mxu0 %v1029
    %v1031 = vand.u32 %v149, 4294901760
    %v1032 = vsub.f32 %v149, %v1031
    %1033 = vmatmul.f32.gmra.mxu0 %v1032
    %v1034 = vpop.f32.mrf.mxu0
    %v1035 = vadd.f32 %v981, %v1034
    %1036 = vdwg.mxu0
    %v1037 = vand.u32 %v93, 4294901760
    %1038 = vmatpush.msra.mxu0 %v1037
    %v1039 = vand.u32 %v92, 4294901760
    %1040 = vmatpush.msra.mxu0 %v1039
    %v1041 = vand.u32 %v91, 4294901760
    %1042 = vmatpush.msra.mxu0 %v1041
    %v1043 = vand.u32 %v90, 4294901760
    %1044 = vmatpush.msra.mxu0 %v1043
    %v1045 = vand.u32 %v89, 4294901760
    %1046 = vmatpush.msra.mxu0 %v1045
    %v1047 = vand.u32 %v88, 4294901760
    %1048 = vmatpush.msra.mxu0 %v1047
    %v1049 = vand.u32 %v87, 4294901760
    %1050 = vmatpush.msra.mxu0 %v1049
    %v1051 = vand.u32 %v86, 4294901760
    %1052 = vmatpush.msra.mxu0 %v1051
    %v1053 = vand.u32 %v85, 4294901760
    %1054 = vmatpush.msra.mxu0 %v1053
    %v1055 = vand.u32 %v84, 4294901760
    %1056 = vmatpush.msra.mxu0 %v1055
    %v1057 = vand.u32 %v83, 4294901760
    %1058 = vmatpush.msra.mxu0 %v1057
    %v1059 = vand.u32 %v82, 4294901760
    %1060 = vmatpush.msra.mxu0 %v1059
    %v1061 = vand.u32 %v81, 4294901760
    %1062 = vmatpush.msra.mxu0 %v1061
    %v1063 = vand.u32 %v80, 4294901760
    %1064 = vmatpush.msra.mxu0 %v1063
    %v1065 = vand.u32 %v79, 4294901760
    %1066 = vmatpush.msra.mxu0 %v1065
    %v1067 = vand.u32 %v78, 4294901760
    %1068 = vmatpush.msra.mxu0 %v1067
    %v1069 = vand.u32 %v149, 4294901760
    %v1070 = vsub.f32 %v149, %v1069
    %v1071 = vand.u32 %v1070, 4294901760
    %1072 = vmatmul.f32.gmra.mxu0 %v1071
    %v1073 = vpop.f32.mrf.mxu0
    %v1074 = vadd.f32 %v1035, %v1073
    %1075 = vdwg.mxu0
    %v1076 = vand.u32 %v93, 4294901760
    %v1077 = vsub.f32 %v93, %v1076
    %v1078 = vand.u32 %v1077, 4294901760
    %1079 = vmatpush.msra.mxu0 %v1078
    %v1080 = vand.u32 %v92, 4294901760
    %v1081 = vsub.f32 %v92, %v1080
    %v1082 = vand.u32 %v1081, 4294901760
    %1083 = vmatpush.msra.mxu0 %v1082
    %v1084 = vand.u32 %v91, 4294901760
    %v1085 = vsub.f32 %v91, %v1084
    %v1086 = vand.u32 %v1085, 4294901760
    %1087 = vmatpush.msra.mxu0 %v1086
    %v1088 = vand.u32 %v90, 4294901760
    %v1089 = vsub.f32 %v90, %v1088
    %v1090 = vand.u32 %v1089, 4294901760
    %1091 = vmatpush.msra.mxu0 %v1090
    %v1092 = vand.u32 %v89, 4294901760
    %v1093 = vsub.f32 %v89, %v1092
    %v1094 = vand.u32 %v1093, 4294901760
    %1095 = vmatpush.msra.mxu0 %v1094
    %v1096 = vand.u32 %v88, 4294901760
    %v1097 = vsub.f32 %v88, %v1096
    %v1098 = vand.u32 %v1097, 4294901760
    %1099 = vmatpush.msra.mxu0 %v1098
    %v1100 = vand.u32 %v87, 4294901760
    %v1101 = vsub.f32 %v87, %v1100
    %v1102 = vand.u32 %v1101, 4294901760
    %1103 = vmatpush.msra.mxu0 %v1102
    %v1104 = vand.u32 %v86, 4294901760
    %v1105 = vsub.f32 %v86, %v1104
    %v1106 = vand.u32 %v1105, 4294901760
    %1107 = vmatpush.msra.mxu0 %v1106
    %v1108 = vand.u32 %v85, 4294901760
    %v1109 = vsub.f32 %v85, %v1108
    %v1110 = vand.u32 %v1109, 4294901760
    %1111 = vmatpush.msra.mxu0 %v1110
    %v1112 = vand.u32 %v84, 4294901760
    %v1113 = vsub.f32 %v84, %v1112
    %v1114 = vand.u32 %v1113, 4294901760
    %1115 = vmatpush.msra.mxu0 %v1114
    %v1116 = vand.u32 %v83, 4294901760
    %v1117 = vsub.f32 %v83, %v1116
    %v1118 = vand.u32 %v1117, 4294901760
    %1119 = vmatpush.msra.mxu0 %v1118
    %v1120 = vand.u32 %v82, 4294901760
    %v1121 = vsub.f32 %v82, %v1120
    %v1122 = vand.u32 %v1121, 4294901760
    %1123 = vmatpush.msra.mxu0 %v1122
    %v1124 = vand.u32 %v81, 4294901760
    %v1125 = vsub.f32 %v81, %v1124
    %v1126 = vand.u32 %v1125, 4294901760
    %1127 = vmatpush.msra.mxu0 %v1126
    %v1128 = vand.u32 %v80, 4294901760
    %v1129 = vsub.f32 %v80, %v1128
    %v1130 = vand.u32 %v1129, 4294901760
    %1131 = vmatpush.msra.mxu0 %v1130
    %v1132 = vand.u32 %v79, 4294901760
    %v1133 = vsub.f32 %v79, %v1132
    %v1134 = vand.u32 %v1133, 4294901760
    %1135 = vmatpush.msra.mxu0 %v1134
    %v1136 = vand.u32 %v78, 4294901760
    %v1137 = vsub.f32 %v78, %v1136
    %v1138 = vand.u32 %v1137, 4294901760
    %1139 = vmatpush.msra.mxu0 %v1138
    %v1140 = vand.u32 %v149, 4294901760
    %1141 = vmatmul.f32.gmra.mxu0 %v1140
    %v1142 = vpop.f32.mrf.mxu0
    %v1143 = vadd.f32 %v1074, %v1142
    %1144 = vdwg.mxu0
    %v1145 = vand.u32 %v93, 4294901760
    %1146 = vmatpush.msra.mxu0 %v1145
    %v1147 = vand.u32 %v92, 4294901760
    %1148 = vmatpush.msra.mxu0 %v1147
    %v1149 = vand.u32 %v91, 4294901760
    %1150 = vmatpush.msra.mxu0 %v1149
    %v1151 = vand.u32 %v90, 4294901760
    %1152 = vmatpush.msra.mxu0 %v1151
    %v1153 = vand.u32 %v89, 4294901760
    %1154 = vmatpush.msra.mxu0 %v1153
    %v1155 = vand.u32 %v88, 4294901760
    %1156 = vmatpush.msra.mxu0 %v1155
    %v1157 = vand.u32 %v87, 4294901760
    %1158 = vmatpush.msra.mxu0 %v1157
    %v1159 = vand.u32 %v86, 4294901760
    %1160 = vmatpush.msra.mxu0 %v1159
    %v1161 = vand.u32 %v85, 4294901760
    %1162 = vmatpush.msra.mxu0 %v1161
    %v1163 = vand.u32 %v84, 4294901760
    %1164 = vmatpush.msra.mxu0 %v1163
    %v1165 = vand.u32 %v83, 4294901760
    %1166 = vmatpush.msra.mxu0 %v1165
    %v1167 = vand.u32 %v82, 4294901760
    %1168 = vmatpush.msra.mxu0 %v1167
    %v1169 = vand.u32 %v81, 4294901760
    %1170 = vmatpush.msra.mxu0 %v1169
    %v1171 = vand.u32 %v80, 4294901760
    %1172 = vmatpush.msra.mxu0 %v1171
    %v1173 = vand.u32 %v79, 4294901760
    %1174 = vmatpush.msra.mxu0 %v1173
    %v1175 = vand.u32 %v78, 4294901760
    %1176 = vmatpush.msra.mxu0 %v1175
    %v1177 = vand.u32 %v149, 4294901760
    %1178 = vmatmul.f32.gmra.mxu0 %v1177
    %v1179 = vpop.f32.mrf.mxu0
    %v1180 = vadd.f32 %v1143, %v1179
    %1181 = vdwg.mxu0
    %v1182 = vand.u32 %v109, 4294901760
    %1183 = vmatpush.msra.mxu0 %v1182
    %v1184 = vand.u32 %v108, 4294901760
    %1185 = vmatpush.msra.mxu0 %v1184
    %v1186 = vand.u32 %v107, 4294901760
    %1187 = vmatpush.msra.mxu0 %v1186
    %v1188 = vand.u32 %v106, 4294901760
    %1189 = vmatpush.msra.mxu0 %v1188
    %v1190 = vand.u32 %v105, 4294901760
    %1191 = vmatpush.msra.mxu0 %v1190
    %v1192 = vand.u32 %v104, 4294901760
    %1193 = vmatpush.msra.mxu0 %v1192
    %v1194 = vand.u32 %v103, 4294901760
    %1195 = vmatpush.msra.mxu0 %v1194
    %v1196 = vand.u32 %v102, 4294901760
    %1197 = vmatpush.msra.mxu0 %v1196
    %v1198 = vand.u32 %v101, 4294901760
    %1199 = vmatpush.msra.mxu0 %v1198
    %v1200 = vand.u32 %v100, 4294901760
    %1201 = vmatpush.msra.mxu0 %v1200
    %v1202 = vand.u32 %v99, 4294901760
    %1203 = vmatpush.msra.mxu0 %v1202
    %v1204 = vand.u32 %v98, 4294901760
    %1205 = vmatpush.msra.mxu0 %v1204
    %v1206 = vand.u32 %v97, 4294901760
    %1207 = vmatpush.msra.mxu0 %v1206
    %v1208 = vand.u32 %v96, 4294901760
    %1209 = vmatpush.msra.mxu0 %v1208
    %v1210 = vand.u32 %v95, 4294901760
    %1211 = vmatpush.msra.mxu0 %v1210
    %v1212 = vand.u32 %v94, 4294901760
    %1213 = vmatpush.msra.mxu0 %v1212
    %v1214 = vand.u32 %v150, 4294901760
    %v1215 = vsub.f32 %v150, %v1214
    %v1216 = vand.u32 %v1215, 4294901760
    %v1217 = vsub.f32 %v1215, %v1216
    %v1218 = vand.u32 %v1217, 4294901760
    %1219 = vmatmul.f32.gmra.mxu0 %v1218
    %v1220 = vpop.f32.mrf.mxu0
    %v1221 = vadd.f32 %v1180, %v1220
    %1222 = vdwg.mxu0
    %v1223 = vand.u32 %v109, 4294901760
    %v1224 = vsub.f32 %v109, %v1223
    %v1225 = vand.u32 %v1224, 4294901760
    %v1226 = vsub.f32 %v1224, %v1225
    %v1227 = vand.u32 %v1226, 4294901760
    %1228 = vmatpush.msra.mxu0 %v1227
    %v1229 = vand.u32 %v108, 4294901760
    %v1230 = vsub.f32 %v108, %v1229
    %v1231 = vand.u32 %v1230, 4294901760
    %v1232 = vsub.f32 %v1230, %v1231
    %v1233 = vand.u32 %v1232, 4294901760
    %1234 = vmatpush.msra.mxu0 %v1233
    %v1235 = vand.u32 %v107, 4294901760
    %v1236 = vsub.f32 %v107, %v1235
    %v1237 = vand.u32 %v1236, 4294901760
    %v1238 = vsub.f32 %v1236, %v1237
    %v1239 = vand.u32 %v1238, 4294901760
    %1240 = vmatpush.msra.mxu0 %v1239
    %v1241 = vand.u32 %v106, 4294901760
    %v1242 = vsub.f32 %v106, %v1241
    %v1243 = vand.u32 %v1242, 4294901760
    %v1244 = vsub.f32 %v1242, %v1243
    %v1245 = vand.u32 %v1244, 4294901760
    %1246 = vmatpush.msra.mxu0 %v1245
    %v1247 = vand.u32 %v105, 4294901760
    %v1248 = vsub.f32 %v105, %v1247
    %v1249 = vand.u32 %v1248, 4294901760
    %v1250 = vsub.f32 %v1248, %v1249
    %v1251 = vand.u32 %v1250, 4294901760
    %1252 = vmatpush.msra.mxu0 %v1251
    %v1253 = vand.u32 %v104, 4294901760
    %v1254 = vsub.f32 %v104, %v1253
    %v1255 = vand.u32 %v1254, 4294901760
    %v1256 = vsub.f32 %v1254, %v1255
    %v1257 = vand.u32 %v1256, 4294901760
    %1258 = vmatpush.msra.mxu0 %v1257
    %v1259 = vand.u32 %v103, 4294901760
    %v1260 = vsub.f32 %v103, %v1259
    %v1261 = vand.u32 %v1260, 4294901760
    %v1262 = vsub.f32 %v1260, %v1261
    %v1263 = vand.u32 %v1262, 4294901760
    %1264 = vmatpush.msra.mxu0 %v1263
    %v1265 = vand.u32 %v102, 4294901760
    %v1266 = vsub.f32 %v102, %v1265
    %v1267 = vand.u32 %v1266, 4294901760
    %v1268 = vsub.f32 %v1266, %v1267
    %v1269 = vand.u32 %v1268, 4294901760
    %1270 = vmatpush.msra.mxu0 %v1269
    %v1271 = vand.u32 %v101, 4294901760
    %v1272 = vsub.f32 %v101, %v1271
    %v1273 = vand.u32 %v1272, 4294901760
    %v1274 = vsub.f32 %v1272, %v1273
    %v1275 = vand.u32 %v1274, 4294901760
    %1276 = vmatpush.msra.mxu0 %v1275
    %v1277 = vand.u32 %v100, 4294901760
    %v1278 = vsub.f32 %v100, %v1277
    %v1279 = vand.u32 %v1278, 4294901760
    %v1280 = vsub.f32 %v1278, %v1279
    %v1281 = vand.u32 %v1280, 4294901760
    %1282 = vmatpush.msra.mxu0 %v1281
    %v1283 = vand.u32 %v99, 4294901760
    %v1284 = vsub.f32 %v99, %v1283
    %v1285 = vand.u32 %v1284, 4294901760
    %v1286 = vsub.f32 %v1284, %v1285
    %v1287 = vand.u32 %v1286, 4294901760
    %1288 = vmatpush.msra.mxu0 %v1287
    %v1289 = vand.u32 %v98, 4294901760
    %v1290 = vsub.f32 %v98, %v1289
    %v1291 = vand.u32 %v1290, 4294901760
    %v1292 = vsub.f32 %v1290, %v1291
    %v1293 = vand.u32 %v1292, 4294901760
    %1294 = vmatpush.msra.mxu0 %v1293
    %v1295 = vand.u32 %v97, 4294901760
    %v1296 = vsub.f32 %v97, %v1295
    %v1297 = vand.u32 %v1296, 4294901760
    %v1298 = vsub.f32 %v1296, %v1297
    %v1299 = vand.u32 %v1298, 4294901760
    %1300 = vmatpush.msra.mxu0 %v1299
    %v1301 = vand.u32 %v96, 4294901760
    %v1302 = vsub.f32 %v96, %v1301
    %v1303 = vand.u32 %v1302, 4294901760
    %v1304 = vsub.f32 %v1302, %v1303
    %v1305 = vand.u32 %v1304, 4294901760
    %1306 = vmatpush.msra.mxu0 %v1305
    %v1307 = vand.u32 %v95, 4294901760
    %v1308 = vsub.f32 %v95, %v1307
    %v1309 = vand.u32 %v1308, 4294901760
    %v1310 = vsub.f32 %v1308, %v1309
    %v1311 = vand.u32 %v1310, 4294901760
    %1312 = vmatpush.msra.mxu0 %v1311
    %v1313 = vand.u32 %v94, 4294901760
    %v1314 = vsub.f32 %v94, %v1313
    %v1315 = vand.u32 %v1314, 4294901760
    %v1316 = vsub.f32 %v1314, %v1315
    %v1317 = vand.u32 %v1316, 4294901760
    %1318 = vmatpush.msra.mxu0 %v1317
    %v1319 = vand.u32 %v150, 4294901760
    %1320 = vmatmul.f32.gmra.mxu0 %v1319
    %v1321 = vpop.f32.mrf.mxu0
    %v1322 = vadd.f32 %v1221, %v1321
    %1323 = vdwg.mxu0
    %v1324 = vand.u32 %v109, 4294901760
    %v1325 = vsub.f32 %v109, %v1324
    %1326 = vmatpush.msra.mxu0 %v1325
    %v1327 = vand.u32 %v108, 4294901760
    %v1328 = vsub.f32 %v108, %v1327
    %1329 = vmatpush.msra.mxu0 %v1328
    %v1330 = vand.u32 %v107, 4294901760
    %v1331 = vsub.f32 %v107, %v1330
    %1332 = vmatpush.msra.mxu0 %v1331
    %v1333 = vand.u32 %v106, 4294901760
    %v1334 = vsub.f32 %v106, %v1333
    %1335 = vmatpush.msra.mxu0 %v1334
    %v1336 = vand.u32 %v105, 4294901760
    %v1337 = vsub.f32 %v105, %v1336
    %1338 = vmatpush.msra.mxu0 %v1337
    %v1339 = vand.u32 %v104, 4294901760
    %v1340 = vsub.f32 %v104, %v1339
    %1341 = vmatpush.msra.mxu0 %v1340
    %v1342 = vand.u32 %v103, 4294901760
    %v1343 = vsub.f32 %v103, %v1342
    %1344 = vmatpush.msra.mxu0 %v1343
    %v1345 = vand.u32 %v102, 4294901760
    %v1346 = vsub.f32 %v102, %v1345
    %1347 = vmatpush.msra.mxu0 %v1346
    %v1348 = vand.u32 %v101, 4294901760
    %v1349 = vsub.f32 %v101, %v1348
    %1350 = vmatpush.msra.mxu0 %v1349
    %v1351 = vand.u32 %v100, 4294901760
    %v1352 = vsub.f32 %v100, %v1351
    %1353 = vmatpush.msra.mxu0 %v1352
    %v1354 = vand.u32 %v99, 4294901760
    %v1355 = vsub.f32 %v99, %v1354
    %1356 = vmatpush.msra.mxu0 %v1355
    %v1357 = vand.u32 %v98, 4294901760
    %v1358 = vsub.f32 %v98, %v1357
    %1359 = vmatpush.msra.mxu0 %v1358
    %v1360 = vand.u32 %v97, 4294901760
    %v1361 = vsub.f32 %v97, %v1360
    %1362 = vmatpush.msra.mxu0 %v1361
    %v1363 = vand.u32 %v96, 4294901760
    %v1364 = vsub.f32 %v96, %v1363
    %1365 = vmatpush.msra.mxu0 %v1364
    %v1366 = vand.u32 %v95, 4294901760
    %v1367 = vsub.f32 %v95, %v1366
    %1368 = vmatpush.msra.mxu0 %v1367
    %v1369 = vand.u32 %v94, 4294901760
    %v1370 = vsub.f32 %v94, %v1369
    %1371 = vmatpush.msra.mxu0 %v1370
    %v1372 = vand.u32 %v150, 4294901760
    %v1373 = vsub.f32 %v150, %v1372
    %1374 = vmatmul.f32.gmra.mxu0 %v1373
    %v1375 = vpop.f32.mrf.mxu0
    %v1376 = vadd.f32 %v1322, %v1375
    %1377 = vdwg.mxu0
    %v1378 = vand.u32 %v109, 4294901760
    %1379 = vmatpush.msra.mxu0 %v1378
    %v1380 = vand.u32 %v108, 4294901760
    %1381 = vmatpush.msra.mxu0 %v1380
    %v1382 = vand.u32 %v107, 4294901760
    %1383 = vmatpush.msra.mxu0 %v1382
    %v1384 = vand.u32 %v106, 4294901760
    %1385 = vmatpush.msra.mxu0 %v1384
    %v1386 = vand.u32 %v105, 4294901760
    %1387 = vmatpush.msra.mxu0 %v1386
    %v1388 = vand.u32 %v104, 4294901760
    %1389 = vmatpush.msra.mxu0 %v1388
    %v1390 = vand.u32 %v103, 4294901760
    %1391 = vmatpush.msra.mxu0 %v1390
    %v1392 = vand.u32 %v102, 4294901760
    %1393 = vmatpush.msra.mxu0 %v1392
    %v1394 = vand.u32 %v101, 4294901760
    %1395 = vmatpush.msra.mxu0 %v1394
    %v1396 = vand.u32 %v100, 4294901760
    %1397 = vmatpush.msra.mxu0 %v1396
    %v1398 = vand.u32 %v99, 4294901760
    %1399 = vmatpush.msra.mxu0 %v1398
    %v1400 = vand.u32 %v98, 4294901760
    %1401 = vmatpush.msra.mxu0 %v1400
    %v1402 = vand.u32 %v97, 4294901760
    %1403 = vmatpush.msra.mxu0 %v1402
    %v1404 = vand.u32 %v96, 4294901760
    %1405 = vmatpush.msra.mxu0 %v1404
    %v1406 = vand.u32 %v95, 4294901760
    %1407 = vmatpush.msra.mxu0 %v1406
    %v1408 = vand.u32 %v94, 4294901760
    %1409 = vmatpush.msra.mxu0 %v1408
    %v1410 = vand.u32 %v150, 4294901760
    %v1411 = vsub.f32 %v150, %v1410
    %v1412 = vand.u32 %v1411, 4294901760
    %1413 = vmatmul.f32.gmra.mxu0 %v1412
    %v1414 = vpop.f32.mrf.mxu0
    %v1415 = vadd.f32 %v1376, %v1414
    %1416 = vdwg.mxu0
    %v1417 = vand.u32 %v109, 4294901760
    %v1418 = vsub.f32 %v109, %v1417
    %v1419 = vand.u32 %v1418, 4294901760
    %1420 = vmatpush.msra.mxu0 %v1419
    %v1421 = vand.u32 %v108, 4294901760
    %v1422 = vsub.f32 %v108, %v1421
    %v1423 = vand.u32 %v1422, 4294901760
    %1424 = vmatpush.msra.mxu0 %v1423
    %v1425 = vand.u32 %v107, 4294901760
    %v1426 = vsub.f32 %v107, %v1425
    %v1427 = vand.u32 %v1426, 4294901760
    %1428 = vmatpush.msra.mxu0 %v1427
    %v1429 = vand.u32 %v106, 4294901760
    %v1430 = vsub.f32 %v106, %v1429
    %v1431 = vand.u32 %v1430, 4294901760
    %1432 = vmatpush.msra.mxu0 %v1431
    %v1433 = vand.u32 %v105, 4294901760
    %v1434 = vsub.f32 %v105, %v1433
    %v1435 = vand.u32 %v1434, 4294901760
    %1436 = vmatpush.msra.mxu0 %v1435
    %v1437 = vand.u32 %v104, 4294901760
    %v1438 = vsub.f32 %v104, %v1437
    %v1439 = vand.u32 %v1438, 4294901760
    %1440 = vmatpush.msra.mxu0 %v1439
    %v1441 = vand.u32 %v103, 4294901760
    %v1442 = vsub.f32 %v103, %v1441
    %v1443 = vand.u32 %v1442, 4294901760
    %1444 = vmatpush.msra.mxu0 %v1443
    %v1445 = vand.u32 %v102, 4294901760
    %v1446 = vsub.f32 %v102, %v1445
    %v1447 = vand.u32 %v1446, 4294901760
    %1448 = vmatpush.msra.mxu0 %v1447
    %v1449 = vand.u32 %v101, 4294901760
    %v1450 = vsub.f32 %v101, %v1449
    %v1451 = vand.u32 %v1450, 4294901760
    %1452 = vmatpush.msra.mxu0 %v1451
    %v1453 = vand.u32 %v100, 4294901760
    %v1454 = vsub.f32 %v100, %v1453
    %v1455 = vand.u32 %v1454, 4294901760
    %1456 = vmatpush.msra.mxu0 %v1455
    %v1457 = vand.u32 %v99, 4294901760
    %v1458 = vsub.f32 %v99, %v1457
    %v1459 = vand.u32 %v1458, 4294901760
    %1460 = vmatpush.msra.mxu0 %v1459
    %v1461 = vand.u32 %v98, 4294901760
    %v1462 = vsub.f32 %v98, %v1461
    %v1463 = vand.u32 %v1462, 4294901760
    %1464 = vmatpush.msra.mxu0 %v1463
    %v1465 = vand.u32 %v97, 4294901760
    %v1466 = vsub.f32 %v97, %v1465
    %v1467 = vand.u32 %v1466, 4294901760
    %1468 = vmatpush.msra.mxu0 %v1467
    %v1469 = vand.u32 %v96, 4294901760
    %v1470 = vsub.f32 %v96, %v1469
    %v1471 = vand.u32 %v1470, 4294901760
    %1472 = vmatpush.msra.mxu0 %v1471
    %v1473 = vand.u32 %v95, 4294901760
    %v1474 = vsub.f32 %v95, %v1473
    %v1475 = vand.u32 %v1474, 4294901760
    %1476 = vmatpush.msra.mxu0 %v1475
    %v1477 = vand.u32 %v94, 4294901760
    %v1478 = vsub.f32 %v94, %v1477
    %v1479 = vand.u32 %v1478, 4294901760
    %1480 = vmatpush.msra.mxu0 %v1479
    %v1481 = vand.u32 %v150, 4294901760
    %1482 = vmatmul.f32.gmra.mxu0 %v1481
    %v1483 = vpop.f32.mrf.mxu0
    %v1484 = vadd.f32 %v1415, %v1483
    %1485 = vdwg.mxu0
    %v1486 = vand.u32 %v109, 4294901760
    %1487 = vmatpush.msra.mxu0 %v1486
    %v1488 = vand.u32 %v108, 4294901760
    %1489 = vmatpush.msra.mxu0 %v1488
    %v1490 = vand.u32 %v107, 4294901760
    %1491 = vmatpush.msra.mxu0 %v1490
    %v1492 = vand.u32 %v106, 4294901760
    %1493 = vmatpush.msra.mxu0 %v1492
    %v1494 = vand.u32 %v105, 4294901760
    %1495 = vmatpush.msra.mxu0 %v1494
    %v1496 = vand.u32 %v104, 4294901760
    %1497 = vmatpush.msra.mxu0 %v1496
    %v1498 = vand.u32 %v103, 4294901760
    %1499 = vmatpush.msra.mxu0 %v1498
    %v1500 = vand.u32 %v102, 4294901760
    %1501 = vmatpush.msra.mxu0 %v1500
    %v1502 = vand.u32 %v101, 4294901760
    %1503 = vmatpush.msra.mxu0 %v1502
    %v1504 = vand.u32 %v100, 4294901760
    %1505 = vmatpush.msra.mxu0 %v1504
    %v1506 = vand.u32 %v99, 4294901760
    %1507 = vmatpush.msra.mxu0 %v1506
    %v1508 = vand.u32 %v98, 4294901760
    %1509 = vmatpush.msra.mxu0 %v1508
    %v1510 = vand.u32 %v97, 4294901760
    %1511 = vmatpush.msra.mxu0 %v1510
    %v1512 = vand.u32 %v96, 4294901760
    %1513 = vmatpush.msra.mxu0 %v1512
    %v1514 = vand.u32 %v95, 4294901760
    %1515 = vmatpush.msra.mxu0 %v1514
    %v1516 = vand.u32 %v94, 4294901760
    %1517 = vmatpush.msra.mxu0 %v1516
    %v1518 = vand.u32 %v150, 4294901760
    %1519 = vmatmul.f32.gmra.mxu0 %v1518
    %v1520 = vpop.f32.mrf.mxu0
    %v1521 = vadd.f32 %v1484, %v1520
    %1522 = vdwg.mxu0
    %v1523 = vand.u32 %v125, 4294901760
    %1524 = vmatpush.msra.mxu0 %v1523
    %v1525 = vand.u32 %v124, 4294901760
    %1526 = vmatpush.msra.mxu0 %v1525
    %v1527 = vand.u32 %v123, 4294901760
    %1528 = vmatpush.msra.mxu0 %v1527
    %v1529 = vand.u32 %v122, 4294901760
    %1530 = vmatpush.msra.mxu0 %v1529
    %v1531 = vand.u32 %v121, 4294901760
    %1532 = vmatpush.msra.mxu0 %v1531
    %v1533 = vand.u32 %v120, 4294901760
    %1534 = vmatpush.msra.mxu0 %v1533
    %v1535 = vand.u32 %v119, 4294901760
    %1536 = vmatpush.msra.mxu0 %v1535
    %v1537 = vand.u32 %v118, 4294901760
    %1538 = vmatpush.msra.mxu0 %v1537
    %v1539 = vand.u32 %v117, 4294901760
    %1540 = vmatpush.msra.mxu0 %v1539
    %v1541 = vand.u32 %v116, 4294901760
    %1542 = vmatpush.msra.mxu0 %v1541
    %v1543 = vand.u32 %v115, 4294901760
    %1544 = vmatpush.msra.mxu0 %v1543
    %v1545 = vand.u32 %v114, 4294901760
    %1546 = vmatpush.msra.mxu0 %v1545
    %v1547 = vand.u32 %v113, 4294901760
    %1548 = vmatpush.msra.mxu0 %v1547
    %v1549 = vand.u32 %v112, 4294901760
    %1550 = vmatpush.msra.mxu0 %v1549
    %v1551 = vand.u32 %v111, 4294901760
    %1552 = vmatpush.msra.mxu0 %v1551
    %v1553 = vand.u32 %v110, 4294901760
    %1554 = vmatpush.msra.mxu0 %v1553
    %v1555 = vand.u32 %v151, 4294901760
    %v1556 = vsub.f32 %v151, %v1555
    %v1557 = vand.u32 %v1556, 4294901760
    %v1558 = vsub.f32 %v1556, %v1557
    %v1559 = vand.u32 %v1558, 4294901760
    %1560 = vmatmul.f32.gmra.mxu0 %v1559
    %v1561 = vpop.f32.mrf.mxu0
    %v1562 = vadd.f32 %v1521, %v1561
    %1563 = vdwg.mxu0
    %v1564 = vand.u32 %v125, 4294901760
    %v1565 = vsub.f32 %v125, %v1564
    %v1566 = vand.u32 %v1565, 4294901760
    %v1567 = vsub.f32 %v1565, %v1566
    %v1568 = vand.u32 %v1567, 4294901760
    %1569 = vmatpush.msra.mxu0 %v1568
    %v1570 = vand.u32 %v124, 4294901760
    %v1571 = vsub.f32 %v124, %v1570
    %v1572 = vand.u32 %v1571, 4294901760
    %v1573 = vsub.f32 %v1571, %v1572
    %v1574 = vand.u32 %v1573, 4294901760
    %1575 = vmatpush.msra.mxu0 %v1574
    %v1576 = vand.u32 %v123, 4294901760
    %v1577 = vsub.f32 %v123, %v1576
    %v1578 = vand.u32 %v1577, 4294901760
    %v1579 = vsub.f32 %v1577, %v1578
    %v1580 = vand.u32 %v1579, 4294901760
    %1581 = vmatpush.msra.mxu0 %v1580
    %v1582 = vand.u32 %v122, 4294901760
    %v1583 = vsub.f32 %v122, %v1582
    %v1584 = vand.u32 %v1583, 4294901760
    %v1585 = vsub.f32 %v1583, %v1584
    %v1586 = vand.u32 %v1585, 4294901760
    %1587 = vmatpush.msra.mxu0 %v1586
    %v1588 = vand.u32 %v121, 4294901760
    %v1589 = vsub.f32 %v121, %v1588
    %v1590 = vand.u32 %v1589, 4294901760
    %v1591 = vsub.f32 %v1589, %v1590
    %v1592 = vand.u32 %v1591, 4294901760
    %1593 = vmatpush.msra.mxu0 %v1592
    %v1594 = vand.u32 %v120, 4294901760
    %v1595 = vsub.f32 %v120, %v1594
    %v1596 = vand.u32 %v1595, 4294901760
    %v1597 = vsub.f32 %v1595, %v1596
    %v1598 = vand.u32 %v1597, 4294901760
    %1599 = vmatpush.msra.mxu0 %v1598
    %v1600 = vand.u32 %v119, 4294901760
    %v1601 = vsub.f32 %v119, %v1600
    %v1602 = vand.u32 %v1601, 4294901760
    %v1603 = vsub.f32 %v1601, %v1602
    %v1604 = vand.u32 %v1603, 4294901760
    %1605 = vmatpush.msra.mxu0 %v1604
    %v1606 = vand.u32 %v118, 4294901760
    %v1607 = vsub.f32 %v118, %v1606
    %v1608 = vand.u32 %v1607, 4294901760
    %v1609 = vsub.f32 %v1607, %v1608
    %v1610 = vand.u32 %v1609, 4294901760
    %1611 = vmatpush.msra.mxu0 %v1610
    %v1612 = vand.u32 %v117, 4294901760
    %v1613 = vsub.f32 %v117, %v1612
    %v1614 = vand.u32 %v1613, 4294901760
    %v1615 = vsub.f32 %v1613, %v1614
    %v1616 = vand.u32 %v1615, 4294901760
    %1617 = vmatpush.msra.mxu0 %v1616
    %v1618 = vand.u32 %v116, 4294901760
    %v1619 = vsub.f32 %v116, %v1618
    %v1620 = vand.u32 %v1619, 4294901760
    %v1621 = vsub.f32 %v1619, %v1620
    %v1622 = vand.u32 %v1621, 4294901760
    %1623 = vmatpush.msra.mxu0 %v1622
    %v1624 = vand.u32 %v115, 4294901760
    %v1625 = vsub.f32 %v115, %v1624
    %v1626 = vand.u32 %v1625, 4294901760
    %v1627 = vsub.f32 %v1625, %v1626
    %v1628 = vand.u32 %v1627, 4294901760
    %1629 = vmatpush.msra.mxu0 %v1628
    %v1630 = vand.u32 %v114, 4294901760
    %v1631 = vsub.f32 %v114, %v1630
    %v1632 = vand.u32 %v1631, 4294901760
    %v1633 = vsub.f32 %v1631, %v1632
    %v1634 = vand.u32 %v1633, 4294901760
    %1635 = vmatpush.msra.mxu0 %v1634
    %v1636 = vand.u32 %v113, 4294901760
    %v1637 = vsub.f32 %v113, %v1636
    %v1638 = vand.u32 %v1637, 4294901760
    %v1639 = vsub.f32 %v1637, %v1638
    %v1640 = vand.u32 %v1639, 4294901760
    %1641 = vmatpush.msra.mxu0 %v1640
    %v1642 = vand.u32 %v112, 4294901760
    %v1643 = vsub.f32 %v112, %v1642
    %v1644 = vand.u32 %v1643, 4294901760
    %v1645 = vsub.f32 %v1643, %v1644
    %v1646 = vand.u32 %v1645, 4294901760
    %1647 = vmatpush.msra.mxu0 %v1646
    %v1648 = vand.u32 %v111, 4294901760
    %v1649 = vsub.f32 %v111, %v1648
    %v1650 = vand.u32 %v1649, 4294901760
    %v1651 = vsub.f32 %v1649, %v1650
    %v1652 = vand.u32 %v1651, 4294901760
    %1653 = vmatpush.msra.mxu0 %v1652
    %v1654 = vand.u32 %v110, 4294901760
    %v1655 = vsub.f32 %v110, %v1654
    %v1656 = vand.u32 %v1655, 4294901760
    %v1657 = vsub.f32 %v1655, %v1656
    %v1658 = vand.u32 %v1657, 4294901760
    %1659 = vmatpush.msra.mxu0 %v1658
    %v1660 = vand.u32 %v151, 4294901760
    %1661 = vmatmul.f32.gmra.mxu0 %v1660
    %v1662 = vpop.f32.mrf.mxu0
    %v1663 = vadd.f32 %v1562, %v1662
    %1664 = vdwg.mxu0
    %v1665 = vand.u32 %v125, 4294901760
    %v1666 = vsub.f32 %v125, %v1665
    %1667 = vmatpush.msra.mxu0 %v1666
    %v1668 = vand.u32 %v124, 4294901760
    %v1669 = vsub.f32 %v124, %v1668
    %1670 = vmatpush.msra.mxu0 %v1669
    %v1671 = vand.u32 %v123, 4294901760
    %v1672 = vsub.f32 %v123, %v1671
    %1673 = vmatpush.msra.mxu0 %v1672
    %v1674 = vand.u32 %v122, 4294901760
    %v1675 = vsub.f32 %v122, %v1674
    %1676 = vmatpush.msra.mxu0 %v1675
    %v1677 = vand.u32 %v121, 4294901760
    %v1678 = vsub.f32 %v121, %v1677
    %1679 = vmatpush.msra.mxu0 %v1678
    %v1680 = vand.u32 %v120, 4294901760
    %v1681 = vsub.f32 %v120, %v1680
    %1682 = vmatpush.msra.mxu0 %v1681
    %v1683 = vand.u32 %v119, 4294901760
    %v1684 = vsub.f32 %v119, %v1683
    %1685 = vmatpush.msra.mxu0 %v1684
    %v1686 = vand.u32 %v118, 4294901760
    %v1687 = vsub.f32 %v118, %v1686
    %1688 = vmatpush.msra.mxu0 %v1687
    %v1689 = vand.u32 %v117, 4294901760
    %v1690 = vsub.f32 %v117, %v1689
    %1691 = vmatpush.msra.mxu0 %v1690
    %v1692 = vand.u32 %v116, 4294901760
    %v1693 = vsub.f32 %v116, %v1692
    %1694 = vmatpush.msra.mxu0 %v1693
    %v1695 = vand.u32 %v115, 4294901760
    %v1696 = vsub.f32 %v115, %v1695
    %1697 = vmatpush.msra.mxu0 %v1696
    %v1698 = vand.u32 %v114, 4294901760
    %v1699 = vsub.f32 %v114, %v1698
    %1700 = vmatpush.msra.mxu0 %v1699
    %v1701 = vand.u32 %v113, 4294901760
    %v1702 = vsub.f32 %v113, %v1701
    %1703 = vmatpush.msra.mxu0 %v1702
    %v1704 = vand.u32 %v112, 4294901760
    %v1705 = vsub.f32 %v112, %v1704
    %1706 = vmatpush.msra.mxu0 %v1705
    %v1707 = vand.u32 %v111, 4294901760
    %v1708 = vsub.f32 %v111, %v1707
    %1709 = vmatpush.msra.mxu0 %v1708
    %v1710 = vand.u32 %v110, 4294901760
    %v1711 = vsub.f32 %v110, %v1710
    %1712 = vmatpush.msra.mxu0 %v1711
    %v1713 = vand.u32 %v151, 4294901760
    %v1714 = vsub.f32 %v151, %v1713
    %1715 = vmatmul.f32.gmra.mxu0 %v1714
    %v1716 = vpop.f32.mrf.mxu0
    %v1717 = vadd.f32 %v1663, %v1716
    %1718 = vdwg.mxu0
    %v1719 = vand.u32 %v125, 4294901760
    %1720 = vmatpush.msra.mxu0 %v1719
    %v1721 = vand.u32 %v124, 4294901760
    %1722 = vmatpush.msra.mxu0 %v1721
    %v1723 = vand.u32 %v123, 4294901760
    %1724 = vmatpush.msra.mxu0 %v1723
    %v1725 = vand.u32 %v122, 4294901760
    %1726 = vmatpush.msra.mxu0 %v1725
    %v1727 = vand.u32 %v121, 4294901760
    %1728 = vmatpush.msra.mxu0 %v1727
    %v1729 = vand.u32 %v120, 4294901760
    %1730 = vmatpush.msra.mxu0 %v1729
    %v1731 = vand.u32 %v119, 4294901760
    %1732 = vmatpush.msra.mxu0 %v1731
    %v1733 = vand.u32 %v118, 4294901760
    %1734 = vmatpush.msra.mxu0 %v1733
    %v1735 = vand.u32 %v117, 4294901760
    %1736 = vmatpush.msra.mxu0 %v1735
    %v1737 = vand.u32 %v116, 4294901760
    %1738 = vmatpush.msra.mxu0 %v1737
    %v1739 = vand.u32 %v115, 4294901760
    %1740 = vmatpush.msra.mxu0 %v1739
    %v1741 = vand.u32 %v114, 4294901760
    %1742 = vmatpush.msra.mxu0 %v1741
    %v1743 = vand.u32 %v113, 4294901760
    %1744 = vmatpush.msra.mxu0 %v1743
    %v1745 = vand.u32 %v112, 4294901760
    %1746 = vmatpush.msra.mxu0 %v1745
    %v1747 = vand.u32 %v111, 4294901760
    %1748 = vmatpush.msra.mxu0 %v1747
    %v1749 = vand.u32 %v110, 4294901760
    %1750 = vmatpush.msra.mxu0 %v1749
    %v1751 = vand.u32 %v151, 4294901760
    %v1752 = vsub.f32 %v151, %v1751
    %v1753 = vand.u32 %v1752, 4294901760
    %1754 = vmatmul.f32.gmra.mxu0 %v1753
    %v1755 = vpop.f32.mrf.mxu0
    %v1756 = vadd.f32 %v1717, %v1755
    %1757 = vdwg.mxu0
    %v1758 = vand.u32 %v125, 4294901760
    %v1759 = vsub.f32 %v125, %v1758
    %v1760 = vand.u32 %v1759, 4294901760
    %1761 = vmatpush.msra.mxu0 %v1760
    %v1762 = vand.u32 %v124, 4294901760
    %v1763 = vsub.f32 %v124, %v1762
    %v1764 = vand.u32 %v1763, 4294901760
    %1765 = vmatpush.msra.mxu0 %v1764
    %v1766 = vand.u32 %v123, 4294901760
    %v1767 = vsub.f32 %v123, %v1766
    %v1768 = vand.u32 %v1767, 4294901760
    %1769 = vmatpush.msra.mxu0 %v1768
    %v1770 = vand.u32 %v122, 4294901760
    %v1771 = vsub.f32 %v122, %v1770
    %v1772 = vand.u32 %v1771, 4294901760
    %1773 = vmatpush.msra.mxu0 %v1772
    %v1774 = vand.u32 %v121, 4294901760
    %v1775 = vsub.f32 %v121, %v1774
    %v1776 = vand.u32 %v1775, 4294901760
    %1777 = vmatpush.msra.mxu0 %v1776
    %v1778 = vand.u32 %v120, 4294901760
    %v1779 = vsub.f32 %v120, %v1778
    %v1780 = vand.u32 %v1779, 4294901760
    %1781 = vmatpush.msra.mxu0 %v1780
    %v1782 = vand.u32 %v119, 4294901760
    %v1783 = vsub.f32 %v119, %v1782
    %v1784 = vand.u32 %v1783, 4294901760
    %1785 = vmatpush.msra.mxu0 %v1784
    %v1786 = vand.u32 %v118, 4294901760
    %v1787 = vsub.f32 %v118, %v1786
    %v1788 = vand.u32 %v1787, 4294901760
    %1789 = vmatpush.msra.mxu0 %v1788
    %v1790 = vand.u32 %v117, 4294901760
    %v1791 = vsub.f32 %v117, %v1790
    %v1792 = vand.u32 %v1791, 4294901760
    %1793 = vmatpush.msra.mxu0 %v1792
    %v1794 = vand.u32 %v116, 4294901760
    %v1795 = vsub.f32 %v116, %v1794
    %v1796 = vand.u32 %v1795, 4294901760
    %1797 = vmatpush.msra.mxu0 %v1796
    %v1798 = vand.u32 %v115, 4294901760
    %v1799 = vsub.f32 %v115, %v1798
    %v1800 = vand.u32 %v1799, 4294901760
    %1801 = vmatpush.msra.mxu0 %v1800
    %v1802 = vand.u32 %v114, 4294901760
    %v1803 = vsub.f32 %v114, %v1802
    %v1804 = vand.u32 %v1803, 4294901760
    %1805 = vmatpush.msra.mxu0 %v1804
    %v1806 = vand.u32 %v113, 4294901760
    %v1807 = vsub.f32 %v113, %v1806
    %v1808 = vand.u32 %v1807, 4294901760
    %1809 = vmatpush.msra.mxu0 %v1808
    %v1810 = vand.u32 %v112, 4294901760
    %v1811 = vsub.f32 %v112, %v1810
    %v1812 = vand.u32 %v1811, 4294901760
    %1813 = vmatpush.msra.mxu0 %v1812
    %v1814 = vand.u32 %v111, 4294901760
    %v1815 = vsub.f32 %v111, %v1814
    %v1816 = vand.u32 %v1815, 4294901760
    %1817 = vmatpush.msra.mxu0 %v1816
    %v1818 = vand.u32 %v110, 4294901760
    %v1819 = vsub.f32 %v110, %v1818
    %v1820 = vand.u32 %v1819, 4294901760
    %1821 = vmatpush.msra.mxu0 %v1820
    %v1822 = vand.u32 %v151, 4294901760
    %1823 = vmatmul.f32.gmra.mxu0 %v1822
    %v1824 = vpop.f32.mrf.mxu0
    %v1825 = vadd.f32 %v1756, %v1824
    %1826 = vdwg.mxu0
    %v1827 = vand.u32 %v125, 4294901760
    %1828 = vmatpush.msra.mxu0 %v1827
    %v1829 = vand.u32 %v124, 4294901760
    %1830 = vmatpush.msra.mxu0 %v1829
    %v1831 = vand.u32 %v123, 4294901760
    %1832 = vmatpush.msra.mxu0 %v1831
    %v1833 = vand.u32 %v122, 4294901760
    %1834 = vmatpush.msra.mxu0 %v1833
    %v1835 = vand.u32 %v121, 4294901760
    %1836 = vmatpush.msra.mxu0 %v1835
    %v1837 = vand.u32 %v120, 4294901760
    %1838 = vmatpush.msra.mxu0 %v1837
    %v1839 = vand.u32 %v119, 4294901760
    %1840 = vmatpush.msra.mxu0 %v1839
    %v1841 = vand.u32 %v118, 4294901760
    %1842 = vmatpush.msra.mxu0 %v1841
    %v1843 = vand.u32 %v117, 4294901760
    %1844 = vmatpush.msra.mxu0 %v1843
    %v1845 = vand.u32 %v116, 4294901760
    %1846 = vmatpush.msra.mxu0 %v1845
    %v1847 = vand.u32 %v115, 4294901760
    %1848 = vmatpush.msra.mxu0 %v1847
    %v1849 = vand.u32 %v114, 4294901760
    %1850 = vmatpush.msra.mxu0 %v1849
    %v1851 = vand.u32 %v113, 4294901760
    %1852 = vmatpush.msra.mxu0 %v1851
    %v1853 = vand.u32 %v112, 4294901760
    %1854 = vmatpush.msra.mxu0 %v1853
    %v1855 = vand.u32 %v111, 4294901760
    %1856 = vmatpush.msra.mxu0 %v1855
    %v1857 = vand.u32 %v110, 4294901760
    %1858 = vmatpush.msra.mxu0 %v1857
    %v1859 = vand.u32 %v151, 4294901760
    %1860 = vmatmul.f32.gmra.mxu0 %v1859
    %v1861 = vpop.f32.mrf.mxu0
    %v1862 = vadd.f32 %v1825, %v1861
    %1863 = vdwg.mxu0
    %v1864 = vand.u32 %v141, 4294901760
    %1865 = vmatpush.msra.mxu0 %v1864
    %v1866 = vand.u32 %v140, 4294901760
    %1867 = vmatpush.msra.mxu0 %v1866
    %v1868 = vand.u32 %v139, 4294901760
    %1869 = vmatpush.msra.mxu0 %v1868
    %v1870 = vand.u32 %v138, 4294901760
    %1871 = vmatpush.msra.mxu0 %v1870
    %v1872 = vand.u32 %v137, 4294901760
    %1873 = vmatpush.msra.mxu0 %v1872
    %v1874 = vand.u32 %v136, 4294901760
    %1875 = vmatpush.msra.mxu0 %v1874
    %v1876 = vand.u32 %v135, 4294901760
    %1877 = vmatpush.msra.mxu0 %v1876
    %v1878 = vand.u32 %v134, 4294901760
    %1879 = vmatpush.msra.mxu0 %v1878
    %v1880 = vand.u32 %v133, 4294901760
    %1881 = vmatpush.msra.mxu0 %v1880
    %v1882 = vand.u32 %v132, 4294901760
    %1883 = vmatpush.msra.mxu0 %v1882
    %v1884 = vand.u32 %v131, 4294901760
    %1885 = vmatpush.msra.mxu0 %v1884
    %v1886 = vand.u32 %v130, 4294901760
    %1887 = vmatpush.msra.mxu0 %v1886
    %v1888 = vand.u32 %v129, 4294901760
    %1889 = vmatpush.msra.mxu0 %v1888
    %v1890 = vand.u32 %v128, 4294901760
    %1891 = vmatpush.msra.mxu0 %v1890
    %v1892 = vand.u32 %v127, 4294901760
    %1893 = vmatpush.msra.mxu0 %v1892
    %v1894 = vand.u32 %v126, 4294901760
    %1895 = vmatpush.msra.mxu0 %v1894
    %v1896 = vand.u32 %v152, 4294901760
    %v1897 = vsub.f32 %v152, %v1896
    %v1898 = vand.u32 %v1897, 4294901760
    %v1899 = vsub.f32 %v1897, %v1898
    %v1900 = vand.u32 %v1899, 4294901760
    %1901 = vmatmul.f32.gmra.mxu0 %v1900
    %v1902 = vpop.f32.mrf.mxu0
    %v1903 = vadd.f32 %v1862, %v1902
    %1904 = vdwg.mxu0
    %v1905 = vand.u32 %v141, 4294901760
    %v1906 = vsub.f32 %v141, %v1905
    %v1907 = vand.u32 %v1906, 4294901760
    %v1908 = vsub.f32 %v1906, %v1907
    %v1909 = vand.u32 %v1908, 4294901760
    %1910 = vmatpush.msra.mxu0 %v1909
    %v1911 = vand.u32 %v140, 4294901760
    %v1912 = vsub.f32 %v140, %v1911
    %v1913 = vand.u32 %v1912, 4294901760
    %v1914 = vsub.f32 %v1912, %v1913
    %v1915 = vand.u32 %v1914, 4294901760
    %1916 = vmatpush.msra.mxu0 %v1915
    %v1917 = vand.u32 %v139, 4294901760
    %v1918 = vsub.f32 %v139, %v1917
    %v1919 = vand.u32 %v1918, 4294901760
    %v1920 = vsub.f32 %v1918, %v1919
    %v1921 = vand.u32 %v1920, 4294901760
    %1922 = vmatpush.msra.mxu0 %v1921
    %v1923 = vand.u32 %v138, 4294901760
    %v1924 = vsub.f32 %v138, %v1923
    %v1925 = vand.u32 %v1924, 4294901760
    %v1926 = vsub.f32 %v1924, %v1925
    %v1927 = vand.u32 %v1926, 4294901760
    %1928 = vmatpush.msra.mxu0 %v1927
    %v1929 = vand.u32 %v137, 4294901760
    %v1930 = vsub.f32 %v137, %v1929
    %v1931 = vand.u32 %v1930, 4294901760
    %v1932 = vsub.f32 %v1930, %v1931
    %v1933 = vand.u32 %v1932, 4294901760
    %1934 = vmatpush.msra.mxu0 %v1933
    %v1935 = vand.u32 %v136, 4294901760
    %v1936 = vsub.f32 %v136, %v1935
    %v1937 = vand.u32 %v1936, 4294901760
    %v1938 = vsub.f32 %v1936, %v1937
    %v1939 = vand.u32 %v1938, 4294901760
    %1940 = vmatpush.msra.mxu0 %v1939
    %v1941 = vand.u32 %v135, 4294901760
    %v1942 = vsub.f32 %v135, %v1941
    %v1943 = vand.u32 %v1942, 4294901760
    %v1944 = vsub.f32 %v1942, %v1943
    %v1945 = vand.u32 %v1944, 4294901760
    %1946 = vmatpush.msra.mxu0 %v1945
    %v1947 = vand.u32 %v134, 4294901760
    %v1948 = vsub.f32 %v134, %v1947
    %v1949 = vand.u32 %v1948, 4294901760
    %v1950 = vsub.f32 %v1948, %v1949
    %v1951 = vand.u32 %v1950, 4294901760
    %1952 = vmatpush.msra.mxu0 %v1951
    %v1953 = vand.u32 %v133, 4294901760
    %v1954 = vsub.f32 %v133, %v1953
    %v1955 = vand.u32 %v1954, 4294901760
    %v1956 = vsub.f32 %v1954, %v1955
    %v1957 = vand.u32 %v1956, 4294901760
    %1958 = vmatpush.msra.mxu0 %v1957
    %v1959 = vand.u32 %v132, 4294901760
    %v1960 = vsub.f32 %v132, %v1959
    %v1961 = vand.u32 %v1960, 4294901760
    %v1962 = vsub.f32 %v1960, %v1961
    %v1963 = vand.u32 %v1962, 4294901760
    %1964 = vmatpush.msra.mxu0 %v1963
    %v1965 = vand.u32 %v131, 4294901760
    %v1966 = vsub.f32 %v131, %v1965
    %v1967 = vand.u32 %v1966, 4294901760
    %v1968 = vsub.f32 %v1966, %v1967
    %v1969 = vand.u32 %v1968, 4294901760
    %1970 = vmatpush.msra.mxu0 %v1969
    %v1971 = vand.u32 %v130, 4294901760
    %v1972 = vsub.f32 %v130, %v1971
    %v1973 = vand.u32 %v1972, 4294901760
    %v1974 = vsub.f32 %v1972, %v1973
    %v1975 = vand.u32 %v1974, 4294901760
    %1976 = vmatpush.msra.mxu0 %v1975
    %v1977 = vand.u32 %v129, 4294901760
    %v1978 = vsub.f32 %v129, %v1977
    %v1979 = vand.u32 %v1978, 4294901760
    %v1980 = vsub.f32 %v1978, %v1979
    %v1981 = vand.u32 %v1980, 4294901760
    %1982 = vmatpush.msra.mxu0 %v1981
    %v1983 = vand.u32 %v128, 4294901760
    %v1984 = vsub.f32 %v128, %v1983
    %v1985 = vand.u32 %v1984, 4294901760
    %v1986 = vsub.f32 %v1984, %v1985
    %v1987 = vand.u32 %v1986, 4294901760
    %1988 = vmatpush.msra.mxu0 %v1987
    %v1989 = vand.u32 %v127, 4294901760
    %v1990 = vsub.f32 %v127, %v1989
    %v1991 = vand.u32 %v1990, 4294901760
    %v1992 = vsub.f32 %v1990, %v1991
    %v1993 = vand.u32 %v1992, 4294901760
    %1994 = vmatpush.msra.mxu0 %v1993
    %v1995 = vand.u32 %v126, 4294901760
    %v1996 = vsub.f32 %v126, %v1995
    %v1997 = vand.u32 %v1996, 4294901760
    %v1998 = vsub.f32 %v1996, %v1997
    %v1999 = vand.u32 %v1998, 4294901760
    %2000 = vmatpush.msra.mxu0 %v1999
    %v2001 = vand.u32 %v152, 4294901760
    %2002 = vmatmul.f32.gmra.mxu0 %v2001
    %v2003 = vpop.f32.mrf.mxu0
    %v2004 = vadd.f32 %v1903, %v2003
    %2005 = vdwg.mxu0
    %v2006 = vand.u32 %v141, 4294901760
    %v2007 = vsub.f32 %v141, %v2006
    %2008 = vmatpush.msra.mxu0 %v2007
    %v2009 = vand.u32 %v140, 4294901760
    %v2010 = vsub.f32 %v140, %v2009
    %2011 = vmatpush.msra.mxu0 %v2010
    %v2012 = vand.u32 %v139, 4294901760
    %v2013 = vsub.f32 %v139, %v2012
    %2014 = vmatpush.msra.mxu0 %v2013
    %v2015 = vand.u32 %v138, 4294901760
    %v2016 = vsub.f32 %v138, %v2015
    %2017 = vmatpush.msra.mxu0 %v2016
    %v2018 = vand.u32 %v137, 4294901760
    %v2019 = vsub.f32 %v137, %v2018
    %2020 = vmatpush.msra.mxu0 %v2019
    %v2021 = vand.u32 %v136, 4294901760
    %v2022 = vsub.f32 %v136, %v2021
    %2023 = vmatpush.msra.mxu0 %v2022
    %v2024 = vand.u32 %v135, 4294901760
    %v2025 = vsub.f32 %v135, %v2024
    %2026 = vmatpush.msra.mxu0 %v2025
    %v2027 = vand.u32 %v134, 4294901760
    %v2028 = vsub.f32 %v134, %v2027
    %2029 = vmatpush.msra.mxu0 %v2028
    %v2030 = vand.u32 %v133, 4294901760
    %v2031 = vsub.f32 %v133, %v2030
    %2032 = vmatpush.msra.mxu0 %v2031
    %v2033 = vand.u32 %v132, 4294901760
    %v2034 = vsub.f32 %v132, %v2033
    %2035 = vmatpush.msra.mxu0 %v2034
    %v2036 = vand.u32 %v131, 4294901760
    %v2037 = vsub.f32 %v131, %v2036
    %2038 = vmatpush.msra.mxu0 %v2037
    %v2039 = vand.u32 %v130, 4294901760
    %v2040 = vsub.f32 %v130, %v2039
    %2041 = vmatpush.msra.mxu0 %v2040
    %v2042 = vand.u32 %v129, 4294901760
    %v2043 = vsub.f32 %v129, %v2042
    %2044 = vmatpush.msra.mxu0 %v2043
    %v2045 = vand.u32 %v128, 4294901760
    %v2046 = vsub.f32 %v128, %v2045
    %2047 = vmatpush.msra.mxu0 %v2046
    %v2048 = vand.u32 %v127, 4294901760
    %v2049 = vsub.f32 %v127, %v2048
    %2050 = vmatpush.msra.mxu0 %v2049
    %v2051 = vand.u32 %v126, 4294901760
    %v2052 = vsub.f32 %v126, %v2051
    %2053 = vmatpush.msra.mxu0 %v2052
    %v2054 = vand.u32 %v152, 4294901760
    %v2055 = vsub.f32 %v152, %v2054
    %2056 = vmatmul.f32.gmra.mxu0 %v2055
    %v2057 = vpop.f32.mrf.mxu0
    %v2058 = vadd.f32 %v2004, %v2057
    %2059 = vdwg.mxu0
    %v2060 = vand.u32 %v141, 4294901760
    %2061 = vmatpush.msra.mxu0 %v2060
    %v2062 = vand.u32 %v140, 4294901760
    %2063 = vmatpush.msra.mxu0 %v2062
    %v2064 = vand.u32 %v139, 4294901760
    %2065 = vmatpush.msra.mxu0 %v2064
    %v2066 = vand.u32 %v138, 4294901760
    %2067 = vmatpush.msra.mxu0 %v2066
    %v2068 = vand.u32 %v137, 4294901760
    %2069 = vmatpush.msra.mxu0 %v2068
    %v2070 = vand.u32 %v136, 4294901760
    %2071 = vmatpush.msra.mxu0 %v2070
    %v2072 = vand.u32 %v135, 4294901760
    %2073 = vmatpush.msra.mxu0 %v2072
    %v2074 = vand.u32 %v134, 4294901760
    %2075 = vmatpush.msra.mxu0 %v2074
    %v2076 = vand.u32 %v133, 4294901760
    %2077 = vmatpush.msra.mxu0 %v2076
    %v2078 = vand.u32 %v132, 4294901760
    %2079 = vmatpush.msra.mxu0 %v2078
    %v2080 = vand.u32 %v131, 4294901760
    %2081 = vmatpush.msra.mxu0 %v2080
    %v2082 = vand.u32 %v130, 4294901760
    %2083 = vmatpush.msra.mxu0 %v2082
    %v2084 = vand.u32 %v129, 4294901760
    %2085 = vmatpush.msra.mxu0 %v2084
    %v2086 = vand.u32 %v128, 4294901760
    %2087 = vmatpush.msra.mxu0 %v2086
    %v2088 = vand.u32 %v127, 4294901760
    %2089 = vmatpush.msra.mxu0 %v2088
    %v2090 = vand.u32 %v126, 4294901760
    %2091 = vmatpush.msra.mxu0 %v2090
    %v2092 = vand.u32 %v152, 4294901760
    %v2093 = vsub.f32 %v152, %v2092
    %v2094 = vand.u32 %v2093, 4294901760
    %2095 = vmatmul.f32.gmra.mxu0 %v2094
    %v2096 = vpop.f32.mrf.mxu0
    %v2097 = vadd.f32 %v2058, %v2096
    %2098 = vdwg.mxu0
    %v2099 = vand.u32 %v141, 4294901760
    %v2100 = vsub.f32 %v141, %v2099
    %v2101 = vand.u32 %v2100, 4294901760
    %2102 = vmatpush.msra.mxu0 %v2101
    %v2103 = vand.u32 %v140, 4294901760
    %v2104 = vsub.f32 %v140, %v2103
    %v2105 = vand.u32 %v2104, 4294901760
    %2106 = vmatpush.msra.mxu0 %v2105
    %v2107 = vand.u32 %v139, 4294901760
    %v2108 = vsub.f32 %v139, %v2107
    %v2109 = vand.u32 %v2108, 4294901760
    %2110 = vmatpush.msra.mxu0 %v2109
    %v2111 = vand.u32 %v138, 4294901760
    %v2112 = vsub.f32 %v138, %v2111
    %v2113 = vand.u32 %v2112, 4294901760
    %2114 = vmatpush.msra.mxu0 %v2113
    %v2115 = vand.u32 %v137, 4294901760
    %v2116 = vsub.f32 %v137, %v2115
    %v2117 = vand.u32 %v2116, 4294901760
    %2118 = vmatpush.msra.mxu0 %v2117
    %v2119 = vand.u32 %v136, 4294901760
    %v2120 = vsub.f32 %v136, %v2119
    %v2121 = vand.u32 %v2120, 4294901760
    %2122 = vmatpush.msra.mxu0 %v2121
    %v2123 = vand.u32 %v135, 4294901760
    %v2124 = vsub.f32 %v135, %v2123
    %v2125 = vand.u32 %v2124, 4294901760
    %2126 = vmatpush.msra.mxu0 %v2125
    %v2127 = vand.u32 %v134, 4294901760
    %v2128 = vsub.f32 %v134, %v2127
    %v2129 = vand.u32 %v2128, 4294901760
    %2130 = vmatpush.msra.mxu0 %v2129
    %v2131 = vand.u32 %v133, 4294901760
    %v2132 = vsub.f32 %v133, %v2131
    %v2133 = vand.u32 %v2132, 4294901760
    %2134 = vmatpush.msra.mxu0 %v2133
    %v2135 = vand.u32 %v132, 4294901760
    %v2136 = vsub.f32 %v132, %v2135
    %v2137 = vand.u32 %v2136, 4294901760
    %2138 = vmatpush.msra.mxu0 %v2137
    %v2139 = vand.u32 %v131, 4294901760
    %v2140 = vsub.f32 %v131, %v2139
    %v2141 = vand.u32 %v2140, 4294901760
    %2142 = vmatpush.msra.mxu0 %v2141
    %v2143 = vand.u32 %v130, 4294901760
    %v2144 = vsub.f32 %v130, %v2143
    %v2145 = vand.u32 %v2144, 4294901760
    %2146 = vmatpush.msra.mxu0 %v2145
    %v2147 = vand.u32 %v129, 4294901760
    %v2148 = vsub.f32 %v129, %v2147
    %v2149 = vand.u32 %v2148, 4294901760
    %2150 = vmatpush.msra.mxu0 %v2149
    %v2151 = vand.u32 %v128, 4294901760
    %v2152 = vsub.f32 %v128, %v2151
    %v2153 = vand.u32 %v2152, 4294901760
    %2154 = vmatpush.msra.mxu0 %v2153
    %v2155 = vand.u32 %v127, 4294901760
    %v2156 = vsub.f32 %v127, %v2155
    %v2157 = vand.u32 %v2156, 4294901760
    %2158 = vmatpush.msra.mxu0 %v2157
    %v2159 = vand.u32 %v126, 4294901760
    %v2160 = vsub.f32 %v126, %v2159
    %v2161 = vand.u32 %v2160, 4294901760
    %2162 = vmatpush.msra.mxu0 %v2161
    %v2163 = vand.u32 %v152, 4294901760
    %2164 = vmatmul.f32.gmra.mxu0 %v2163
    %v2165 = vpop.f32.mrf.mxu0
    %v2166 = vadd.f32 %v2097, %v2165
    %2167 = vdwg.mxu0
    %v2168 = vand.u32 %v141, 4294901760
    %2169 = vmatpush.msra.mxu0 %v2168
    %v2170 = vand.u32 %v140, 4294901760
    %2171 = vmatpush.msra.mxu0 %v2170
    %v2172 = vand.u32 %v139, 4294901760
    %2173 = vmatpush.msra.mxu0 %v2172
    %v2174 = vand.u32 %v138, 4294901760
    %2175 = vmatpush.msra.mxu0 %v2174
    %v2176 = vand.u32 %v137, 4294901760
    %2177 = vmatpush.msra.mxu0 %v2176
    %v2178 = vand.u32 %v136, 4294901760
    %2179 = vmatpush.msra.mxu0 %v2178
    %v2180 = vand.u32 %v135, 4294901760
    %2181 = vmatpush.msra.mxu0 %v2180
    %v2182 = vand.u32 %v134, 4294901760
    %2183 = vmatpush.msra.mxu0 %v2182
    %v2184 = vand.u32 %v133, 4294901760
    %2185 = vmatpush.msra.mxu0 %v2184
    %v2186 = vand.u32 %v132, 4294901760
    %2187 = vmatpush.msra.mxu0 %v2186
    %v2188 = vand.u32 %v131, 4294901760
    %2189 = vmatpush.msra.mxu0 %v2188
    %v2190 = vand.u32 %v130, 4294901760
    %2191 = vmatpush.msra.mxu0 %v2190
    %v2192 = vand.u32 %v129, 4294901760
    %2193 = vmatpush.msra.mxu0 %v2192
    %v2194 = vand.u32 %v128, 4294901760
    %2195 = vmatpush.msra.mxu0 %v2194
    %v2196 = vand.u32 %v127, 4294901760
    %2197 = vmatpush.msra.mxu0 %v2196
    %v2198 = vand.u32 %v126, 4294901760
    %2199 = vmatpush.msra.mxu0 %v2198
    %v2200 = vand.u32 %v152, 4294901760
    %2201 = vmatmul.f32.gmra.mxu0 %v2200
    %v2202 = vpop.f32.mrf.mxu0
    %v2203 = vadd.f32 %v2166, %v2202
    %2204 = vdwg.mxu0
    %2205 = vst [vmem:[#allocation7] sm:$0x3] %v2203
    // Predicated region
    $region18: #{tpu_custom_call.1} parent=1 // pred_check
      _
    $region19: #{tpu_custom_call.1} parent=1 // pred_check_branch
      %2207 = sbr.rel (0) target = $region21
    $region20: #{tpu_custom_call.1} parent=1 // pred_region
      %2209 = vsyncadd [#allocation4], 0
      %s2211 = sshll.u32 [#allocation7], 4
      %s2212 = int_to_ptr.vmem [resolvable:$true] %s2211
      %s2213 = sshll.u32 %s2, 4
      %s2214 = int_to_ptr.hbm [resolvable:$true] %s2213
      %2216 = dma.vmem_to_hbm [thread:$0]  %s2212, 32, %s2214, [#allocation4]
    $region21: #{tpu_custom_call.1} parent=1 // pred_fallthru
      _
    // Predicated region
    $region22: #{tpu_custom_call.1} parent=1 // pred_check
      _
    $region23: #{tpu_custom_call.1} parent=1 // pred_check_branch
      %2218 = sbr.rel (0) target = $region25
    $region24: #{tpu_custom_call.1} parent=1 // pred_region
      %2220 = dma.done [#allocation4], 32
    $region25: #{tpu_custom_call.1} parent=1 // pred_fallthru
      _
    %2221 = vsyncpa [#allocation3], 1
    %2222 = vsyncpa [#allocation6], 1
    %2223 = vsyncpa [#allocation4], 1

</llo_original>
